<compile_context>
chip_gen: v7x
topology: tpu7x:2x2x1
jax: 0.10.0
libtpu: 0.0.40
codegen_flags: <defaults>
</compile_context>

<pallas_src>
import functools

import jax
import jax.numpy as jnp
from jax import lax
from jax.experimental import pallas as pl
from jax.experimental.pallas import tpu as pltpu

# Make both the in-kernel MXU matmuls and the pure-JAX reference use full-f32
# matmul precision so the correctness check can be tight (1e-4).
jax.config.update("jax_default_matmul_precision", "highest")


# ----------------------------- configuration -------------------------------
OP_CHANNEL = 16          # op_channel
ALPHA = 0.5
SQUEEZE_RADIO = 2
GROUP_SIZE = 2
GROUP_KERNEL_SIZE = 3

UP = int(ALPHA * OP_CHANNEL)            # 8
LOW = OP_CHANNEL - UP                   # 8
UPS = UP // SQUEEZE_RADIO               # 4  (squeeze1 out channels)
LOWS = LOW // SQUEEZE_RADIO             # 4  (squeeze2 out channels)
PWC2_OUT = OP_CHANNEL - LOWS            # 12

SQ_ROWS = UPS + LOWS                    # 8   rows 0:8 of packed weight
W_ROWS = SQ_ROWS + OP_CHANNEL           # 24  total packed-weight rows
W_COLS = 3 * UPS + LOWS + 1             # 17  [left|center+PWC1|right|W2|bias]

N = 2                                    # batch
L = 128                                  # sequence length (lane-aligned)


# ------------------------------- kernel ------------------------------------
def cru_kernel(x_ref, w_ref, out_ref, *, seq_len):
    # x_ref / out_ref: (C, L) — one batch element (batch axis lives on the grid).
    x = x_ref[...]                                           # (C, L)

    # Fused squeeze1/squeeze2 via block-diagonal weight: one K=C matmul.
    sq = jnp.dot(w_ref[0:SQ_ROWS, 0:OP_CHANNEL], x,
                 preferred_element_type=jnp.float32)         # (8, L) = [up_s; low_s]
    up_s = sq[:UPS, :]                                       # (4, L)
    low_s = sq[UPS:, :]                                      # (4, L)

    # +/-1 lane shifts of up_s for the k=3 GWC taps (XLU rotate).  The wrapped
    # edge lane is zeroed to reproduce Conv1d zero padding.  Shifts kept
    # non-negative (seq_len-1 == roll by -1).
    lane = lax.broadcasted_iota(jnp.int32, (UPS, seq_len), 1)
    sm1 = jnp.where(lane == 0, 0.0,
                    pltpu.roll(up_s, 1, axis=1))             # input at l-1
    sp1 = jnp.where(lane == seq_len - 1, 0.0,
                    pltpu.roll(up_s, seq_len - 1, axis=1))   # input at l+1

    r0 = SQ_ROWS
    # Y1 = GWC(up_s) + PWC1(up_s): three accumulating K=4 matmuls + bias add.
    y1 = (jnp.dot(w_ref[r0:, UPS:2 * UPS], up_s,
                  preferred_element_type=jnp.float32)        # center tap + PWC1
          + jnp.dot(w_ref[r0:, 0:UPS], sm1,
                    preferred_element_type=jnp.float32)      # left tap
          + jnp.dot(w_ref[r0:, 2 * UPS:3 * UPS], sp1,
                    preferred_element_type=jnp.float32)      # right tap
          + w_ref[r0:, 3 * UPS + LOWS:3 * UPS + LOWS + 1])   # GWC bias (C,1)
    # Y2 = [PWC2(low_s); low_s]: one K=4 matmul against [wpwc2; I].
    y2 = jnp.dot(w_ref[r0:, 3 * UPS:3 * UPS + LOWS], low_s,
                 preferred_element_type=jnp.float32)         # (C, L)

    # AdaptiveAvgPool1d(1) + softmax over the 2C channels of [Y1; Y2],
    # computed without any channel concatenation; exact reciprocal.
    m1 = jnp.mean(y1, axis=-1, keepdims=True)                # (C, 1)
    m2 = jnp.mean(y2, axis=-1, keepdims=True)                # (C, 1)
    mmax = jnp.maximum(jnp.max(m1, keepdims=True),
                       jnp.max(m2, keepdims=True))           # (1, 1)
    e1 = jnp.exp(m1 - mmax)
    e2 = jnp.exp(m2 - mmax)
    inv = 1.0 / (jnp.sum(e1, keepdims=True) + jnp.sum(e2, keepdims=True))
    out_ref[...] = (e1 * inv) * y1 + (e2 * inv) * y2


# ------------------------------- wrapper ------------------------------------
@jax.jit
def cru_pallas(x, w_all):
    n, c, ll = x.shape
    kernel = functools.partial(cru_kernel, seq_len=ll)
    return pl.pallas_call(
        kernel,
        out_shape=jax.ShapeDtypeStruct((n, c, ll), jnp.float32),
        grid=(n,),
        in_specs=[
            pl.BlockSpec((pl.Squeezed(), c, ll), lambda i: (i, 0, 0)),  # x
            pl.BlockSpec(w_all.shape, lambda i: (0, 0)),                # packed weights
        ],
        out_specs=pl.BlockSpec((pl.Squeezed(), c, ll), lambda i: (i, 0, 0)),
        compiler_params=pltpu.CompilerParams(
            dimension_semantics=("parallel",)),
    )(x, w_all)


# --------------------------- pure-JAX reference ------------------------------
def cru_reference(x, wsq1, wsq2, wgwc_grouped, bgwc_vec, wpwc1, wpwc2):
    dn = ("NCH", "OIH", "NCH")
    conv1x1 = lambda inp, w: jnp.einsum("oi,nil->nol", w, inp)
    up, low = x[:, :UP, :], x[:, UP:, :]
    up_s = conv1x1(up, wsq1)
    low_s = conv1x1(low, wsq2)
    gwc = lax.conv_general_dilated(
        up_s, wgwc_grouped, window_strides=(1,), padding=((1, 1),),
        dimension_numbers=dn, feature_group_count=GROUP_SIZE)
    gwc = gwc + bgwc_vec[None, :, None]
    y1 = gwc + conv1x1(up_s, wpwc1)
    y2 = jnp.concatenate([conv1x1(low_s, wpwc2), low_s], axis=1)
    out = jnp.concatenate([y1, y2], axis=1)
    mean = jnp.mean(out, axis=-1, keepdims=True)
    out = jax.nn.softmax(mean, axis=1) * out
    return out[:, :OP_CHANNEL, :] + out[:, OP_CHANNEL:, :]


# --------------------------- weight packing ----------------------------------
def pack_weights(wsq1, wsq2, wgwc_grouped, bgwc_vec, wpwc1, wpwc2):
    """Pack every parameter into a single (24, 17) f32 array.

    rows 0:8,  cols 0:16 : block-diagonal fused squeeze  [wsq1 ; wsq2]
    rows 8:24, cols 0:4  : GWC tap @ l-1 (group-masked dense)
    rows 8:24, cols 4:8  : GWC tap @ l   + PWC1
    rows 8:24, cols 8:12 : GWC tap @ l+1
    rows 8:24, cols 12:16: [PWC2 ; I]  (Y2 = PWC2(low_s) concat low_s)
    rows 8:24, col  16   : GWC bias
    """
    ipg = UPS // GROUP_SIZE
    opg = OP_CHANNEL // GROUP_SIZE

    # Dense (group-masked) GWC weight per tap: (C, UPS, 3).
    wgwc_dense = jnp.zeros((OP_CHANNEL, UPS, GROUP_KERNEL_SIZE), jnp.float32)
    for g in range(GROUP_SIZE):
        wgwc_dense = wgwc_dense.at[
            g * opg:(g + 1) * opg, g * ipg:(g + 1) * ipg, :
        ].set(wgwc_grouped[g * opg:(g + 1) * opg])

    w = jnp.zeros((W_ROWS, W_COLS), jnp.float32)
    # Fused squeeze (block diagonal).
    w = w.at[:UPS, :UP].set(wsq1)
    w = w.at[UPS:SQ_ROWS, UP:OP_CHANNEL].set(wsq2)
    # Y1 / Y2 weights.
    r0 = SQ_ROWS
    w = w.at[r0:, 0:UPS].set(wgwc_dense[:, :, 0])                       # left tap
    w = w.at[r0:, UPS:2 * UPS].set(wgwc_dense[:, :, 1] + wpwc1)         # center + PWC1
    w = w.at[r0:, 2 * UPS:3 * UPS].set(wgwc_dense[:, :, 2])             # right tap
    w = w.at[r0:r0 + PWC2_OUT, 3 * UPS:3 * UPS + LOWS].set(wpwc2)       # PWC2
    w = w.at[r0 + PWC2_OUT:, 3 * UPS:3 * UPS + LOWS].set(
        jnp.eye(LOWS, dtype=jnp.float32))                               # low_s pass-through
    w = w.at[r0:, 3 * UPS + LOWS].set(bgwc_vec)                         # GWC bias
    return w


# ---------------------------------- main -------------------------------------
if __name__ == "__main__":
    key = jax.random.PRNGKey(0)
    keys = jax.random.split(key, 8)

    x = jax.random.normal(keys[0], (N, OP_CHANNEL, L), jnp.float32)

    # Deterministic parameter init (shapes follow the nn.Module __init__).
    wsq1 = 0.2 * jax.random.normal(keys[1], (UPS, UP), jnp.float32)          # squeeze1 (k=1)
    wsq2 = 0.2 * jax.random.normal(keys[2], (LOWS, LOW), jnp.float32)        # squeeze2 (k=1)
    ipg = UPS // GROUP_SIZE
    wgwc_grouped = 0.2 * jax.random.normal(
        keys[3], (OP_CHANNEL, ipg, GROUP_KERNEL_SIZE), jnp.float32)          # GWC grouped weight
    bgwc_vec = 0.1 * jax.random.normal(keys[4], (OP_CHANNEL,), jnp.float32)  # GWC bias
    wpwc1 = 0.2 * jax.random.normal(keys[5], (OP_CHANNEL, UPS), jnp.float32)
    wpwc2 = 0.2 * jax.random.normal(keys[6], (PWC2_OUT, LOWS), jnp.float32)

    w_all = pack_weights(wsq1, wsq2, wgwc_grouped, bgwc_vec, wpwc1, wpwc2)

    out = cru_pallas(x, w_all)
    out = jax.block_until_ready(out)

    ref = cru_reference(x, wsq1, wsq2, wgwc_grouped, bgwc_vec, wpwc1, wpwc2)
    ref = jax.block_until_ready(ref)

    assert out.shape == (N, OP_CHANNEL, L), out.shape
    assert jnp.allclose(out, ref, rtol=1e-4, atol=1e-4), (
        float(jnp.max(jnp.abs(out - ref))))

    print("KERNEL_OK")
</pallas_src>

<mosaic_0001>
module attributes {stable_mosaic.version = 11 : i64} {
  func.func @cru_kernel(%arg0: i32, %arg1: memref<1x16x128xf32, #tpu.memory_space<vmem>>, %arg2: memref<24x17xf32, #tpu.memory_space<vmem>>, %arg3: memref<1x16x128xf32, #tpu.memory_space<vmem>>) attributes {dimension_semantics = [#tpu.dimension_semantics<parallel>], iteration_bounds = array<i64: 2>, scalar_prefetch = 0 : i64, scratch_operands = 0 : i64, tpu.core_type = #tpu.core_type<tc>, window_params = [{transform_indices = @transform_0, window_bounds = array<i64: 1, 16, 128>}, {pipeline_mode = #tpu.pipeline_mode<synchronous>, transform_indices = @transform_1, window_bounds = array<i64: 24, 17>}, {transform_indices = @transform_2, window_bounds = array<i64: 1, 16, 128>}]} {
    %c0 = arith.constant 0 : index
    %c0_0 = arith.constant 0 : index
    %c0_1 = arith.constant 0 : index
    %0 = vector.load %arg1[%c0, %c0_0, %c0_1] : memref<1x16x128xf32, #tpu.memory_space<vmem>>, vector<1x16x128xf32>
    %1 = vector.shape_cast %0 : vector<1x16x128xf32> to vector<16x128xf32>
    %c0_2 = arith.constant 0 : index
    %c0_3 = arith.constant 0 : index
    %2 = vector.load %arg2[%c0_2, %c0_3] : memref<24x17xf32, #tpu.memory_space<vmem>>, vector<8x16xf32>
    %cst = arith.constant dense<0.000000e+00> : vector<8x128xf32>
    %3 = tpu.matmul %2, %1, %cst {dimension_numbers = #tpu.dot_dimension_numbers<[1], [0], [0], [1], [0, 0, 1, 1], [], []>, precision = #tpu.contract_precision<fp32>} : vector<8x16xf32>, vector<16x128xf32>, vector<8x128xf32> -> vector<8x128xf32>
    %4 = vector.extract_strided_slice %3 {offsets = [0, 0], sizes = [4, 128], strides = [1, 1]} : vector<8x128xf32> to vector<4x128xf32>
    %5 = vector.extract_strided_slice %3 {offsets = [4, 0], sizes = [4, 128], strides = [1, 1]} : vector<8x128xf32> to vector<4x128xf32>
    %6 = tpu.iota {dimensions = array<i32: 1>} : vector<4x128xi32>
    %c0_i32 = arith.constant 0 : i32
    %7 = vector.broadcast %c0_i32 : i32 to vector<4x128xi32>
    %8 = arith.cmpi eq, %6, %7 : vector<4x128xi32>
    %c1_i32 = arith.constant 1 : i32
    %9 = tpu.dynamic_rotate %4 by %c1_i32 dim 1 : vector<4x128xf32>, i32 -> vector<4x128xf32>
    %cst_4 = arith.constant 0.000000e+00 : f32
    %10 = vector.broadcast %cst_4 : f32 to vector<4x128xf32>
    %11 = arith.select %8, %10, %9 : vector<4x128xi1>, vector<4x128xf32>
    %c127_i32 = arith.constant 127 : i32
    %12 = vector.broadcast %c127_i32 : i32 to vector<4x128xi32>
    %13 = arith.cmpi eq, %6, %12 : vector<4x128xi32>
    %c127_i32_5 = arith.constant 127 : i32
    %14 = tpu.dynamic_rotate %4 by %c127_i32_5 dim 1 : vector<4x128xf32>, i32 -> vector<4x128xf32>
    %cst_6 = arith.constant 0.000000e+00 : f32
    %15 = vector.broadcast %cst_6 : f32 to vector<4x128xf32>
    %16 = arith.select %13, %15, %14 : vector<4x128xi1>, vector<4x128xf32>
    %c8 = arith.constant 8 : index
    %c4 = arith.constant 4 : index
    %17 = vector.load %arg2[%c8, %c4] : memref<24x17xf32, #tpu.memory_space<vmem>>, vector<16x4xf32>
    %cst_7 = arith.constant dense<0.000000e+00> : vector<16x128xf32>
    %18 = tpu.matmul %17, %4, %cst_7 {dimension_numbers = #tpu.dot_dimension_numbers<[1], [0], [0], [1], [0, 0, 1, 1], [], []>, precision = #tpu.contract_precision<fp32>} : vector<16x4xf32>, vector<4x128xf32>, vector<16x128xf32> -> vector<16x128xf32>
    %c8_8 = arith.constant 8 : index
    %c0_9 = arith.constant 0 : index
    %19 = vector.load %arg2[%c8_8, %c0_9] : memref<24x17xf32, #tpu.memory_space<vmem>>, vector<16x4xf32>
    %cst_10 = arith.constant dense<0.000000e+00> : vector<16x128xf32>
    %20 = tpu.matmul %19, %11, %cst_10 {dimension_numbers = #tpu.dot_dimension_numbers<[1], [0], [0], [1], [0, 0, 1, 1], [], []>, precision = #tpu.contract_precision<fp32>} : vector<16x4xf32>, vector<4x128xf32>, vector<16x128xf32> -> vector<16x128xf32>
    %21 = arith.addf %18, %20 : vector<16x128xf32>
    %c8_11 = arith.constant 8 : index
    %c8_12 = arith.constant 8 : index
    %22 = vector.load %arg2[%c8_11, %c8_12] : memref<24x17xf32, #tpu.memory_space<vmem>>, vector<16x4xf32>
    %cst_13 = arith.constant dense<0.000000e+00> : vector<16x128xf32>
    %23 = tpu.matmul %22, %16, %cst_13 {dimension_numbers = #tpu.dot_dimension_numbers<[1], [0], [0], [1], [0, 0, 1, 1], [], []>, precision = #tpu.contract_precision<fp32>} : vector<16x4xf32>, vector<4x128xf32>, vector<16x128xf32> -> vector<16x128xf32>
    %24 = arith.addf %21, %23 : vector<16x128xf32>
    %c8_14 = arith.constant 8 : index
    %c16 = arith.constant 16 : index
    %25 = vector.load %arg2[%c8_14, %c16] : memref<24x17xf32, #tpu.memory_space<vmem>>, vector<16x1xf32>
    %26 = vector.broadcast %25 : vector<16x1xf32> to vector<16x128xf32>
    %27 = arith.addf %24, %26 : vector<16x128xf32>
    %c8_15 = arith.constant 8 : index
    %c12 = arith.constant 12 : index
    %28 = vector.load %arg2[%c8_15, %c12] : memref<24x17xf32, #tpu.memory_space<vmem>>, vector<16x4xf32>
    %cst_16 = arith.constant dense<0.000000e+00> : vector<16x128xf32>
    %29 = tpu.matmul %28, %5, %cst_16 {dimension_numbers = #tpu.dot_dimension_numbers<[1], [0], [0], [1], [0, 0, 1, 1], [], []>, precision = #tpu.contract_precision<fp32>} : vector<16x4xf32>, vector<4x128xf32>, vector<16x128xf32> -> vector<16x128xf32>
    %cst_17 = arith.constant dense<0.000000e+00> : vector<16xf32>
    %30 = vector.multi_reduction <add>, %27, %cst_17 [1] : vector<16x128xf32> to vector<16xf32>
    %31 = vector.shape_cast %30 : vector<16xf32> to vector<16x1xf32>
    %cst_18 = arith.constant 1.280000e+02 : f32
    %32 = vector.broadcast %cst_18 : f32 to vector<16x1xf32>
    %33 = arith.divf %31, %32 : vector<16x1xf32>
    %cst_19 = arith.constant dense<0.000000e+00> : vector<16xf32>
    %34 = vector.multi_reduction <add>, %29, %cst_19 [1] : vector<16x128xf32> to vector<16xf32>
    %35 = vector.shape_cast %34 : vector<16xf32> to vector<16x1xf32>
    %cst_20 = arith.constant 1.280000e+02 : f32
    %36 = vector.broadcast %cst_20 : f32 to vector<16x1xf32>
    %37 = arith.divf %35, %36 : vector<16x1xf32>
    %38 = vector.shape_cast %33 : vector<16x1xf32> to vector<1x16x1xf32>
    %cst_21 = arith.constant dense<0xFF800000> : vector<1xf32>
    %39 = vector.multi_reduction <maximumf>, %38, %cst_21 [1, 2] : vector<1x16x1xf32> to vector<1xf32>
    %40 = vector.shape_cast %39 : vector<1xf32> to vector<1x1x1xf32>
    %41 = vector.extract %40[0, 0, 0] : f32 from vector<1x1x1xf32>
    %42 = vector.broadcast %41 : f32 to vector<1x1xf32>
    %43 = vector.shape_cast %37 : vector<16x1xf32> to vector<1x16x1xf32>
    %cst_22 = arith.constant dense<0xFF800000> : vector<1xf32>
    %44 = vector.multi_reduction <maximumf>, %43, %cst_22 [1, 2] : vector<1x16x1xf32> to vector<1xf32>
    %45 = vector.shape_cast %44 : vector<1xf32> to vector<1x1x1xf32>
    %46 = vector.extract %45[0, 0, 0] : f32 from vector<1x1x1xf32>
    %47 = vector.broadcast %46 : f32 to vector<1x1xf32>
    %48 = arith.maximumf %42, %47 : vector<1x1xf32>
    %49 = vector.broadcast %48 : vector<1x1xf32> to vector<16x1xf32>
    %50 = arith.subf %33, %49 : vector<16x1xf32>
    %51 = math.exp %50 : vector<16x1xf32>
    %52 = vector.broadcast %48 : vector<1x1xf32> to vector<16x1xf32>
    %53 = arith.subf %37, %52 : vector<16x1xf32>
    %54 = math.exp %53 : vector<16x1xf32>
    %55 = vector.shape_cast %51 : vector<16x1xf32> to vector<1x16x1xf32>
    %cst_23 = arith.constant dense<0.000000e+00> : vector<1xf32>
    %56 = vector.multi_reduction <add>, %55, %cst_23 [1, 2] : vector<1x16x1xf32> to vector<1xf32>
    %57 = vector.shape_cast %56 : vector<1xf32> to vector<1x1x1xf32>
    %58 = vector.extract %57[0, 0, 0] : f32 from vector<1x1x1xf32>
    %59 = vector.broadcast %58 : f32 to vector<1x1xf32>
    %60 = vector.shape_cast %54 : vector<16x1xf32> to vector<1x16x1xf32>
    %cst_24 = arith.constant dense<0.000000e+00> : vector<1xf32>
    %61 = vector.multi_reduction <add>, %60, %cst_24 [1, 2] : vector<1x16x1xf32> to vector<1xf32>
    %62 = vector.shape_cast %61 : vector<1xf32> to vector<1x1x1xf32>
    %63 = vector.extract %62[0, 0, 0] : f32 from vector<1x1x1xf32>
    %64 = vector.broadcast %63 : f32 to vector<1x1xf32>
    %65 = arith.addf %59, %64 : vector<1x1xf32>
    %cst_25 = arith.constant 1.000000e+00 : f32
    %66 = vector.broadcast %cst_25 : f32 to vector<1x1xf32>
    %67 = arith.divf %66, %65 : vector<1x1xf32>
    %68 = vector.broadcast %67 : vector<1x1xf32> to vector<16x1xf32>
    %69 = arith.mulf %51, %68 : vector<16x1xf32>
    %70 = vector.broadcast %69 : vector<16x1xf32> to vector<16x128xf32>
    %71 = arith.mulf %70, %27 : vector<16x128xf32>
    %72 = vector.broadcast %67 : vector<1x1xf32> to vector<16x1xf32>
    %73 = arith.mulf %54, %72 : vector<16x1xf32>
    %74 = vector.broadcast %73 : vector<16x1xf32> to vector<16x128xf32>
    %75 = arith.mulf %74, %29 : vector<16x128xf32>
    %76 = arith.addf %71, %75 : vector<16x128xf32>
    %c0_26 = arith.constant 0 : index
    %c0_27 = arith.constant 0 : index
    %c0_28 = arith.constant 0 : index
    %77 = vector.load %arg3[%c0_26, %c0_27, %c0_28] : memref<1x16x128xf32, #tpu.memory_space<vmem>>, vector<1x16x128xf32>
    %78 = vector.shape_cast %77 : vector<1x16x128xf32> to vector<16x128xf32>
    %79 = vector.shape_cast %76 : vector<16x128xf32> to vector<1x16x128xf32>
    tpu.vector_store %arg3[%c0_26, %c0_27, %c0_28], %79 {strides = array<i32>} : memref<1x16x128xf32, #tpu.memory_space<vmem>>, vector<1x16x128xf32>,
    return
  }
  func.func @transform_0(%arg0: i32) -> (i32, i32, i32) {
    %c0_i32 = arith.constant 0 : i32
    %c0_i32_0 = arith.constant 0 : i32
    %c0_i32_1 = arith.constant 0 : i32
    return %arg0, %c0_i32, %c0_i32_0 : i32, i32, i32
  }
  func.func @transform_1(%arg0: i32) -> (i32, i32) {
    %c0_i32 = arith.constant 0 : i32
    %c0_i32_0 = arith.constant 0 : i32
    %c0_i32_1 = arith.constant 0 : i32
    return %c0_i32, %c0_i32_0 : i32, i32
  }
  func.func @transform_2(%arg0: i32) -> (i32, i32, i32) {
    %c0_i32 = arith.constant 0 : i32
    %c0_i32_0 = arith.constant 0 : i32
    %c0_i32_1 = arith.constant 0 : i32
    return %arg0, %c0_i32, %c0_i32_0 : i32, i32, i32
  }
}

</mosaic_0001>

<llo_original>
// kernel: cru_pallas.1
$region0: #{cru_pallas.1}
  #allocation0 [shape = 'u32[]', space=smem, size = 0x4, offset = 0x4, fixed_abs, tag = 'smem constant byte address 0x4 - core index']
  #allocation1 [shape = 'u32[144,128]{1,0:T(1,128)}', space=vmem, size = 0x12000, scoped, tag = 'internal scratch']
  %s0 = inlined_call_operand.hbm [shape: f32[2,16,128], index: 0, kind: input, shape index: {}]
  %s1 = inlined_call_operand.hbm [shape: f32[24,17], index: 1, kind: input, shape index: {}]
  %s2 = inlined_call_operand.hbm [shape: f32[2,16,128], index: 2, kind: output, shape index: {}]
  %s3 = sld [smem:[#allocation0]]
  $region49: #{cru_pallas.1} parent=0
    _
  %s5 = ssub.s32 1, %s3
  %s6 = scalar_select 0, %s5, %s3
  $region1: #{cru_pallas.1} parent=0
    #allocation2 [shape = 'u8[16384]{0}', space=vmem, size = 0x4000, scoped, tag = 'input window, operand 0']
    #allocation3 [shape = 's32[2]{0}', space=sflag, size = 0x8, scoped, tag = 'scoped memory for cru_pallas.1']
    #allocation4 [shape = 's32[2]{0}', space=sflag, size = 0x8, scoped, tag = 'scoped memory for cru_pallas.1']
    #allocation5 [shape = 'u8[12288]{0}', space=vmem, size = 0x3000, scoped, tag = 'input window, operand 1, single buffered']
    #allocation6 [shape = 's32[1]{0}', space=sflag, size = 0x4, scoped, tag = 'scoped memory for cru_pallas.1']
    #allocation7 [shape = 'u8[16384]{0}', space=vmem, size = 0x4000, scoped, tag = 'output window, operand 0']
    %7 = vsyncpa [#allocation3], 0
    %s8 = scalar_lea.sflag [#allocation3], 1
    %9 = vsyncpa %s8, 0
    %10 = vsyncpa [#allocation6], 0
    %11 = vsyncpa [#allocation4], 0
    %s12 = scalar_lea.sflag [#allocation4], 1
    %13 = vsyncpa %s12, 0
    loop: start=0, step=1, limit=4
    $region2: #{cru_pallas.1} parent=1 // loop_pre_header
      _
    $region3: #{cru_pallas.1} parent=1 // loop_header
      %s15 = sphi 0, %s19
      %p16 = scmp.ge.s32.totalorder %s15, 4
      %s25 = sphi 0, %s27
      %s28 = sphi 0, %s25
      %s29 = sphi 0, %s28
      %s45 = sphi 0, %s29
      %s49 = sphi 0, %s49
      %s51 = sphi 0, %s49
      %s52 = sphi 0, %s51
      %s66 = sphi 0, %s52
      %s72 = sphi 0, %s74
      %s75 = sphi 0, %s72
      %s76 = sphi 0, %s75
      %s92 = sphi 0, %s76
    $region4: #{cru_pallas.1} parent=1 // loop_header_branch
      %18 = sbr.rel (%p16) target = $region8
    $region5: #{cru_pallas.1} parent=1 // loop_body
      %s20 = ssub.s32 %s15, 1
      %s21 = ssub.s32 %s15, 2
      %s22 = sadd.s32 %s15, 1
      %s23 = ssub.s32 %s15, %s22
      %p24 = scmp.eq.s32.totalorder %s23, 0
      %s26 = sadd.s32 %s25, 1
      %s27 = scalar_select %p24, %s25, %s26
      %p30 = pneg %p24
      %p31 = scmp.eq.s32.totalorder %s15, 1
      %p32 = por %p30, %p31
      %p33 = scmp.ne.s32.totalorder %s25, %s28
      %p34 = scmp.eq.s32.totalorder %s15, 0
      %p35 = por %p33, %p34
      %p36 = scmp.ne.s32.totalorder %s25, %s28
      %p37 = scmp.eq.s32.totalorder %s20, 1
      %p38 = por %p36, %p37
      %p39 = scmp.ne.s32.totalorder %s28, %s29
      %p40 = scmp.eq.s32.totalorder %s20, 0
      %p41 = por %p39, %p40
      %p42 = scmp.ne.s32.totalorder %s28, %s29
      %p43 = scmp.eq.s32.totalorder %s21, 1
      %p44 = por %p42, %p43
      %p46 = scmp.ne.s32.totalorder %s29, %s45
      %p47 = scmp.eq.s32.totalorder %s21, 0
      %p48 = por %p46, %p47
      %s50 = sadd.s32 %s49, 1
      %p53 = scmp.eq.s32.totalorder %s15, 1
      %p54 = scmp.ne.s32.totalorder %s49, %s51
      %p55 = scmp.eq.s32.totalorder %s15, 0
      %p56 = por %p54, %p55
      %p57 = scmp.ne.s32.totalorder %s49, %s51
      %p58 = scmp.eq.s32.totalorder %s20, 1
      %p59 = por %p57, %p58
      %p60 = scmp.ne.s32.totalorder %s51, %s52
      %p61 = scmp.eq.s32.totalorder %s20, 0
      %p62 = por %p60, %p61
      %p63 = scmp.ne.s32.totalorder %s51, %s52
      %p64 = scmp.eq.s32.totalorder %s21, 1
      %p65 = por %p63, %p64
      %p67 = scmp.ne.s32.totalorder %s52, %s66
      %p68 = scmp.eq.s32.totalorder %s21, 0
      %p69 = por %p67, %p68
      %s70 = ssub.s32 %s15, %s22
      %p71 = scmp.eq.s32.totalorder %s70, 0
      %s73 = sadd.s32 %s72, 1
      %s74 = scalar_select %p71, %s72, %s73
      %p77 = pneg %p71
      %p78 = scmp.eq.s32.totalorder %s15, 1
      %p79 = por %p77, %p78
      %p80 = scmp.ne.s32.totalorder %s72, %s75
      %p81 = scmp.eq.s32.totalorder %s15, 0
      %p82 = por %p80, %p81
      %p83 = scmp.ne.s32.totalorder %s72, %s75
      %p84 = scmp.eq.s32.totalorder %s20, 1
      %p85 = por %p83, %p84
      %p86 = scmp.ne.s32.totalorder %s75, %s76
      %p87 = scmp.eq.s32.totalorder %s20, 0
      %p88 = por %p86, %p87
      %p89 = scmp.ne.s32.totalorder %s75, %s76
      %p90 = scmp.eq.s32.totalorder %s21, 1
      %p91 = por %p89, %p90
      %p93 = scmp.ne.s32.totalorder %s76, %s92
      %p94 = scmp.eq.s32.totalorder %s21, 0
      %p95 = por %p93, %p94
      %p96 = scmp.le.s32.totalorder 1, %s15
      %p97 = scmp.lt.s32.totalorder %s15, 3
      %p98 = pnand %p96, %p97
      %p99 = pneg %p98
      // Predicated region
      $region9: #{cru_pallas.1} parent=5 // pred_check
        _
      $region10: #{cru_pallas.1} parent=5 // pred_check_branch
        %101 = sbr.rel (%p98) target = $region12
      $region11: #{cru_pallas.1} parent=5 // pred_region
        %s102 = ssub.s32 %s15, 1
        // Predicated region
        $region13: #{cru_pallas.1} parent=11 // pred_check
          %p103 = pneg %p62
        $region14: #{cru_pallas.1} parent=11 // pred_check_branch
          %105 = sbr.rel (%p103) target = $region16
        $region15: #{cru_pallas.1} parent=11 // pred_region
          %s107 = ssub.s32 384, 384
          %108 = vsyncadd [#allocation6], %s107
          %s109 = sshll.u32 [#allocation5], 4
          %s110 = int_to_ptr.vmem [resolvable:$true] %s109
          %115 = dma.hbm_to_vmem [thread:$0]  %s1, 384, %s110, [#allocation6], 128, 128, 8
        $region16: #{cru_pallas.1} parent=11 // pred_fallthru
          _
      $region12: #{cru_pallas.1} parent=5 // pred_fallthru
        _
      %p116 = scmp.lt.s32.totalorder %s15, 2
      // Predicated region
      $region17: #{cru_pallas.1} parent=5 // pred_check
        %p117 = pneg %p116
      $region18: #{cru_pallas.1} parent=5 // pred_check_branch
        %119 = sbr.rel (%p117) target = $region20
      $region19: #{cru_pallas.1} parent=5 // pred_region
        // Predicated region
        $region21: #{cru_pallas.1} parent=19 // pred_check
          %p120 = pneg %p35
        $region22: #{cru_pallas.1} parent=19 // pred_check_branch
          %122 = sbr.rel (%p120) target = $region24
        $region23: #{cru_pallas.1} parent=19 // pred_region
          %s123 = sand.u32 %s25, 1
          %s124 = scalar_lea.sflag [#allocation3], %s123
          %s125 = sand.u32 %s25, 1
          %s126 = smul.addr %s125, 16
          %s127 = scalar_lea.vmem [#allocation2], %s126
          %s129 = ssub.s32 256, 256
          %130 = vsyncadd %s124, %s129
          %s131 = smul.addr %s15, 2
          %s132 = smul.addr %s131, 128
          %s133 = scalar_lea.hbm %s0, %s132
          %s134 = sshll.u32 %s127, 4
          %s135 = int_to_ptr.vmem [resolvable:$true] %s134
          %140 = dma.hbm_to_vmem [thread:$0]  %s133, 256, %s135, %s124, 128, 128, 8
        $region24: #{cru_pallas.1} parent=19 // pred_fallthru
          _
      $region20: #{cru_pallas.1} parent=5 // pred_fallthru
        _
      %p141 = scmp.le.s32.totalorder 1, %s15
      %p142 = scmp.lt.s32.totalorder %s15, 3
      %p143 = pnand %p141, %p142
      %p144 = pneg %p143
      // Predicated region
      $region25: #{cru_pallas.1} parent=5 // pred_check
        _
      $region26: #{cru_pallas.1} parent=5 // pred_check_branch
        %146 = sbr.rel (%p143) target = $region28
      $region27: #{cru_pallas.1} parent=5 // pred_region
        %s147 = ssub.s32 %s15, 1
        %s148 = sand.u32 %s28, 1
        %s149 = scalar_lea.sflag [#allocation3], %s148
        %s150 = sand.u32 %s28, 1
        %s151 = smul.addr %s150, 16
        %s152 = scalar_lea.vmem [#allocation2], %s151
        // Predicated region
        $region29: #{cru_pallas.1} parent=27 // pred_check
          %p153 = pneg %p41
        $region30: #{cru_pallas.1} parent=27 // pred_check_branch
          %155 = sbr.rel (%p153) target = $region32
        $region31: #{cru_pallas.1} parent=27 // pred_region
          %156 = dma.done %s149, 256
        $region32: #{cru_pallas.1} parent=27 // pred_fallthru
          _
        // Predicated region
        $region33: #{cru_pallas.1} parent=27 // pred_check
          %p157 = pneg %p62
        $region34: #{cru_pallas.1} parent=27 // pred_check_branch
          %159 = sbr.rel (%p157) target = $region36
        $region35: #{cru_pallas.1} parent=27 // pred_region
          %160 = dma.done [#allocation6], 384
        $region36: #{cru_pallas.1} parent=27 // pred_fallthru
          _
        %s161 = sand.u32 %s28, 1
        %s162 = scalar_lea.sflag [#allocation3], %s161
        %s163 = sand.u32 %s28, 1
        %s164 = smul.addr %s163, 16
        %s165 = scalar_lea.vmem [#allocation2], %s164
        %p166 = pneg %p41
        %p167 = pneg %p38
        %p168 = pneg %p62
        %p169 = pneg %p59
        %p170 = pneg %p88
        %p171 = pneg %p85
        %s172 = sand.u32 %s75, 1
        %s173 = scalar_lea.sflag [#allocation4], %s172
        %s174 = sand.u32 %s75, 1
        %s175 = smul.addr %s174, 16
        %s176 = scalar_lea.vmem [#allocation7], %s175
        %v177 = vld [vmem:[%s152] sm:$0xff]
        %v178 = vld [vmem:[%s152 + $0x8] sm:$0xff]
        %v179 = vld [vmem:[#allocation5] sm:$0xff]
        %vm180 = vcmask 130048
        %v182 = vsel %vm180, %v179, 0
        %184 = vmatprep.subr.mxu0 0.0
        %v185 = vand.u32 %v177, 4294901760
        %186 = vmatpush1.msra.mxu0 %v185
        %187 = vmatprep.subr.mxu0 0.0
        %v188 = vand.u32 %v178, 4294901760
        %189 = vmatpush1.msra.mxu0 %v188
        %190 = vmatprep.subr.mxu0 0.0
        %191 = vmatpush1.msra.mxu0 0.0
        %192 = vmatprep.subr.mxu0 0.0
        %193 = vmatpush1.msra.mxu0 0.0
        %194 = vmatprep.subr.mxu0 0.0
        %195 = vmatpush1.msra.mxu0 0.0
        %196 = vmatprep.subr.mxu0 0.0
        %197 = vmatpush1.msra.mxu0 0.0
        %198 = vmatprep.subr.mxu0 0.0
        %199 = vmatpush1.msra.mxu0 0.0
        %200 = vmatprep.subr.mxu0 0.0
        %201 = vmatpush1.msra.mxu0 0.0
        %202 = vmatprep.subr.mxu0 0.0
        %203 = vmatpush1.msra.mxu0 0.0
        %204 = vmatprep.subr.mxu0 0.0
        %205 = vmatpush1.msra.mxu0 0.0
        %206 = vmatprep.subr.mxu0 0.0
        %207 = vmatpush1.msra.mxu0 0.0
        %208 = vmatprep.subr.mxu0 0.0
        %209 = vmatpush1.msra.mxu0 0.0
        %210 = vmatprep.subr.mxu0 0.0
        %211 = vmatpush1.msra.mxu0 0.0
        %212 = vmatprep.subr.mxu0 0.0
        %213 = vmatpush1.msra.mxu0 0.0
        %214 = vmatprep.subr.mxu0 0.0
        %215 = vmatpush1.msra.mxu0 0.0
        %216 = vmatprep.subr.mxu0 0.0
        %217 = vmatpush1.msra.mxu0 0.0
        %218 = vmatprep.subr.mxu0 0.0
        %219 = vmatpush1.msra.mxu0 0.0
        %220 = vmatprep.subr.mxu0 0.0
        %221 = vmatpush1.msra.mxu0 0.0
        %222 = vmatprep.subr.mxu0 0.0
        %223 = vmatpush1.msra.mxu0 0.0
        %224 = vmatprep.subr.mxu0 0.0
        %225 = vmatpush1.msra.mxu0 0.0
        %226 = vmatprep.subr.mxu0 0.0
        %227 = vmatpush1.msra.mxu0 0.0
        %228 = vmatprep.subr.mxu0 0.0
        %229 = vmatpush1.msra.mxu0 0.0
        %230 = vmatprep.subr.mxu0 0.0
        %231 = vmatpush1.msra.mxu0 0.0
        %232 = vmatprep.subr.mxu0 0.0
        %233 = vmatpush1.msra.mxu0 0.0
        %234 = vmatprep.subr.mxu0 0.0
        %235 = vmatpush1.msra.mxu0 0.0
        %236 = vmatprep.subr.mxu0 0.0
        %237 = vmatpush1.msra.mxu0 0.0
        %238 = vmatprep.subr.mxu0 0.0
        %239 = vmatpush1.msra.mxu0 0.0
        %240 = vmatprep.subr.mxu0 0.0
        %241 = vmatpush1.msra.mxu0 0.0
        %242 = vmatprep.subr.mxu0 0.0
        %243 = vmatpush1.msra.mxu0 0.0
        %244 = vmatprep.subr.mxu0 0.0
        %245 = vmatpush1.msra.mxu0 0.0
        %246 = vmatprep.subr.mxu0 0.0
        %247 = vmatpush1.msra.mxu0 0.0
        %248 = vmatprep.subr.mxu0 0.0
        %249 = vmatpush1.msra.mxu0 0.0
        %250 = vmatprep.mubr.f32.mxu0 0.0
        %v251 = vand.u32 %v182, 4294901760
        %v252 = vsub.f32 %v182, %v251
        %v253 = vand.u32 %v252, 4294901760
        %v254 = vsub.f32 %v252, %v253
        %v255 = vand.u32 %v254, 4294901760
        %256 = vmatmul.mubr.f32.gmra.mrb[0].mxu0 %v255
        %v257 = vpop.f32.mrb[0].mxu0
        %v258 = vadd.f32 0.0, %v257
        %v259 = vpop.f32.mrb[0].mxu0
        %260 = vdwg.mxu0
        %261 = vmatprep.subr.mxu0 0.0
        %v262 = vand.u32 %v177, 4294901760
        %v263 = vsub.f32 %v177, %v262
        %v264 = vand.u32 %v263, 4294901760
        %v265 = vsub.f32 %v263, %v264
        %v266 = vand.u32 %v265, 4294901760
        %267 = vmatpush1.msra.mxu0 %v266
        %268 = vmatprep.subr.mxu0 0.0
        %v269 = vand.u32 %v178, 4294901760
        %v270 = vsub.f32 %v178, %v269
        %v271 = vand.u32 %v270, 4294901760
        %v272 = vsub.f32 %v270, %v271
        %v273 = vand.u32 %v272, 4294901760
        %274 = vmatpush1.msra.mxu0 %v273
        %275 = vmatprep.subr.mxu0 0.0
        %276 = vmatpush1.msra.mxu0 0.0
        %277 = vmatprep.subr.mxu0 0.0
        %278 = vmatpush1.msra.mxu0 0.0
        %279 = vmatprep.subr.mxu0 0.0
        %280 = vmatpush1.msra.mxu0 0.0
        %281 = vmatprep.subr.mxu0 0.0
        %282 = vmatpush1.msra.mxu0 0.0
        %283 = vmatprep.subr.mxu0 0.0
        %284 = vmatpush1.msra.mxu0 0.0
        %285 = vmatprep.subr.mxu0 0.0
        %286 = vmatpush1.msra.mxu0 0.0
        %287 = vmatprep.subr.mxu0 0.0
        %288 = vmatpush1.msra.mxu0 0.0
        %289 = vmatprep.subr.mxu0 0.0
        %290 = vmatpush1.msra.mxu0 0.0
        %291 = vmatprep.subr.mxu0 0.0
        %292 = vmatpush1.msra.mxu0 0.0
        %293 = vmatprep.subr.mxu0 0.0
        %294 = vmatpush1.msra.mxu0 0.0
        %295 = vmatprep.subr.mxu0 0.0
        %296 = vmatpush1.msra.mxu0 0.0
        %297 = vmatprep.subr.mxu0 0.0
        %298 = vmatpush1.msra.mxu0 0.0
        %299 = vmatprep.subr.mxu0 0.0
        %300 = vmatpush1.msra.mxu0 0.0
        %301 = vmatprep.subr.mxu0 0.0
        %302 = vmatpush1.msra.mxu0 0.0
        %303 = vmatprep.subr.mxu0 0.0
        %304 = vmatpush1.msra.mxu0 0.0
        %305 = vmatprep.subr.mxu0 0.0
        %306 = vmatpush1.msra.mxu0 0.0
        %307 = vmatprep.subr.mxu0 0.0
        %308 = vmatpush1.msra.mxu0 0.0
        %309 = vmatprep.subr.mxu0 0.0
        %310 = vmatpush1.msra.mxu0 0.0
        %311 = vmatprep.subr.mxu0 0.0
        %312 = vmatpush1.msra.mxu0 0.0
        %313 = vmatprep.subr.mxu0 0.0
        %314 = vmatpush1.msra.mxu0 0.0
        %315 = vmatprep.subr.mxu0 0.0
        %316 = vmatpush1.msra.mxu0 0.0
        %317 = vmatprep.subr.mxu0 0.0
        %318 = vmatpush1.msra.mxu0 0.0
        %319 = vmatprep.subr.mxu0 0.0
        %320 = vmatpush1.msra.mxu0 0.0
        %321 = vmatprep.subr.mxu0 0.0
        %322 = vmatpush1.msra.mxu0 0.0
        %323 = vmatprep.subr.mxu0 0.0
        %324 = vmatpush1.msra.mxu0 0.0
        %325 = vmatprep.subr.mxu0 0.0
        %326 = vmatpush1.msra.mxu0 0.0
        %327 = vmatprep.subr.mxu0 0.0
        %328 = vmatpush1.msra.mxu0 0.0
        %329 = vmatprep.subr.mxu0 0.0
        %330 = vmatpush1.msra.mxu0 0.0
        %331 = vmatprep.subr.mxu0 0.0
        %332 = vmatpush1.msra.mxu0 0.0
        %333 = vmatprep.subr.mxu0 0.0
        %334 = vmatpush1.msra.mxu0 0.0
        %335 = vmatprep.mubr.f32.mxu0 0.0
        %v336 = vand.u32 %v182, 4294901760
        %337 = vmatmul.mubr.f32.gmra.mrb[0].mxu0 %v336
        %v338 = vpop.f32.mrb[0].mxu0
        %v339 = vadd.f32 %v258, %v338
        %v340 = vpop.f32.mrb[0].mxu0
        %341 = vdwg.mxu0
        %342 = vmatprep.subr.mxu0 0.0
        %v343 = vand.u32 %v177, 4294901760
        %v344 = vsub.f32 %v177, %v343
        %345 = vmatpush1.msra.mxu0 %v344
        %346 = vmatprep.subr.mxu0 0.0
        %v347 = vand.u32 %v178, 4294901760
        %v348 = vsub.f32 %v178, %v347
        %349 = vmatpush1.msra.mxu0 %v348
        %350 = vmatprep.subr.mxu0 0.0
        %351 = vmatpush1.msra.mxu0 0.0
        %352 = vmatprep.subr.mxu0 0.0
        %353 = vmatpush1.msra.mxu0 0.0
        %354 = vmatprep.subr.mxu0 0.0
        %355 = vmatpush1.msra.mxu0 0.0
        %356 = vmatprep.subr.mxu0 0.0
        %357 = vmatpush1.msra.mxu0 0.0
        %358 = vmatprep.subr.mxu0 0.0
        %359 = vmatpush1.msra.mxu0 0.0
        %360 = vmatprep.subr.mxu0 0.0
        %361 = vmatpush1.msra.mxu0 0.0
        %362 = vmatprep.subr.mxu0 0.0
        %363 = vmatpush1.msra.mxu0 0.0
        %364 = vmatprep.subr.mxu0 0.0
        %365 = vmatpush1.msra.mxu0 0.0
        %366 = vmatprep.subr.mxu0 0.0
        %367 = vmatpush1.msra.mxu0 0.0
        %368 = vmatprep.subr.mxu0 0.0
        %369 = vmatpush1.msra.mxu0 0.0
        %370 = vmatprep.subr.mxu0 0.0
        %371 = vmatpush1.msra.mxu0 0.0
        %372 = vmatprep.subr.mxu0 0.0
        %373 = vmatpush1.msra.mxu0 0.0
        %374 = vmatprep.subr.mxu0 0.0
        %375 = vmatpush1.msra.mxu0 0.0
        %376 = vmatprep.subr.mxu0 0.0
        %377 = vmatpush1.msra.mxu0 0.0
        %378 = vmatprep.subr.mxu0 0.0
        %379 = vmatpush1.msra.mxu0 0.0
        %380 = vmatprep.subr.mxu0 0.0
        %381 = vmatpush1.msra.mxu0 0.0
        %382 = vmatprep.subr.mxu0 0.0
        %383 = vmatpush1.msra.mxu0 0.0
        %384 = vmatprep.subr.mxu0 0.0
        %385 = vmatpush1.msra.mxu0 0.0
        %386 = vmatprep.subr.mxu0 0.0
        %387 = vmatpush1.msra.mxu0 0.0
        %388 = vmatprep.subr.mxu0 0.0
        %389 = vmatpush1.msra.mxu0 0.0
        %390 = vmatprep.subr.mxu0 0.0
        %391 = vmatpush1.msra.mxu0 0.0
        %392 = vmatprep.subr.mxu0 0.0
        %393 = vmatpush1.msra.mxu0 0.0
        %394 = vmatprep.subr.mxu0 0.0
        %395 = vmatpush1.msra.mxu0 0.0
        %396 = vmatprep.subr.mxu0 0.0
        %397 = vmatpush1.msra.mxu0 0.0
        %398 = vmatprep.subr.mxu0 0.0
        %399 = vmatpush1.msra.mxu0 0.0
        %400 = vmatprep.subr.mxu0 0.0
        %401 = vmatpush1.msra.mxu0 0.0
        %402 = vmatprep.subr.mxu0 0.0
        %403 = vmatpush1.msra.mxu0 0.0
        %404 = vmatprep.subr.mxu0 0.0
        %405 = vmatpush1.msra.mxu0 0.0
        %406 = vmatprep.subr.mxu0 0.0
        %407 = vmatpush1.msra.mxu0 0.0
        %408 = vmatprep.subr.mxu0 0.0
        %409 = vmatpush1.msra.mxu0 0.0
        %410 = vmatprep.mubr.f32.mxu0 0.0
        %v411 = vand.u32 %v182, 4294901760
        %v412 = vsub.f32 %v182, %v411
        %413 = vmatmul.mubr.f32.gmra.mrb[0].mxu0 %v412
        %v414 = vpop.f32.mrb[0].mxu0
        %v415 = vadd.f32 %v339, %v414
        %v416 = vpop.f32.mrb[0].mxu0
        %417 = vdwg.mxu0
        %418 = vmatprep.subr.mxu0 0.0
        %v419 = vand.u32 %v177, 4294901760
        %420 = vmatpush1.msra.mxu0 %v419
        %421 = vmatprep.subr.mxu0 0.0
        %v422 = vand.u32 %v178, 4294901760
        %423 = vmatpush1.msra.mxu0 %v422
        %424 = vmatprep.subr.mxu0 0.0
        %425 = vmatpush1.msra.mxu0 0.0
        %426 = vmatprep.subr.mxu0 0.0
        %427 = vmatpush1.msra.mxu0 0.0
        %428 = vmatprep.subr.mxu0 0.0
        %429 = vmatpush1.msra.mxu0 0.0
        %430 = vmatprep.subr.mxu0 0.0
        %431 = vmatpush1.msra.mxu0 0.0
        %432 = vmatprep.subr.mxu0 0.0
        %433 = vmatpush1.msra.mxu0 0.0
        %434 = vmatprep.subr.mxu0 0.0
        %435 = vmatpush1.msra.mxu0 0.0
        %436 = vmatprep.subr.mxu0 0.0
        %437 = vmatpush1.msra.mxu0 0.0
        %438 = vmatprep.subr.mxu0 0.0
        %439 = vmatpush1.msra.mxu0 0.0
        %440 = vmatprep.subr.mxu0 0.0
        %441 = vmatpush1.msra.mxu0 0.0
        %442 = vmatprep.subr.mxu0 0.0
        %443 = vmatpush1.msra.mxu0 0.0
        %444 = vmatprep.subr.mxu0 0.0
        %445 = vmatpush1.msra.mxu0 0.0
        %446 = vmatprep.subr.mxu0 0.0
        %447 = vmatpush1.msra.mxu0 0.0
        %448 = vmatprep.subr.mxu0 0.0
        %449 = vmatpush1.msra.mxu0 0.0
        %450 = vmatprep.subr.mxu0 0.0
        %451 = vmatpush1.msra.mxu0 0.0
        %452 = vmatprep.subr.mxu0 0.0
        %453 = vmatpush1.msra.mxu0 0.0
        %454 = vmatprep.subr.mxu0 0.0
        %455 = vmatpush1.msra.mxu0 0.0
        %456 = vmatprep.subr.mxu0 0.0
        %457 = vmatpush1.msra.mxu0 0.0
        %458 = vmatprep.subr.mxu0 0.0
        %459 = vmatpush1.msra.mxu0 0.0
        %460 = vmatprep.subr.mxu0 0.0
        %461 = vmatpush1.msra.mxu0 0.0
        %462 = vmatprep.subr.mxu0 0.0
        %463 = vmatpush1.msra.mxu0 0.0
        %464 = vmatprep.subr.mxu0 0.0
        %465 = vmatpush1.msra.mxu0 0.0
        %466 = vmatprep.subr.mxu0 0.0
        %467 = vmatpush1.msra.mxu0 0.0
        %468 = vmatprep.subr.mxu0 0.0
        %469 = vmatpush1.msra.mxu0 0.0
        %470 = vmatprep.subr.mxu0 0.0
        %471 = vmatpush1.msra.mxu0 0.0
        %472 = vmatprep.subr.mxu0 0.0
        %473 = vmatpush1.msra.mxu0 0.0
        %474 = vmatprep.subr.mxu0 0.0
        %475 = vmatpush1.msra.mxu0 0.0
        %476 = vmatprep.subr.mxu0 0.0
        %477 = vmatpush1.msra.mxu0 0.0
        %478 = vmatprep.subr.mxu0 0.0
        %479 = vmatpush1.msra.mxu0 0.0
        %480 = vmatprep.subr.mxu0 0.0
        %481 = vmatpush1.msra.mxu0 0.0
        %482 = vmatprep.subr.mxu0 0.0
        %483 = vmatpush1.msra.mxu0 0.0
        %484 = vmatprep.mubr.f32.mxu0 0.0
        %v485 = vand.u32 %v182, 4294901760
        %v486 = vsub.f32 %v182, %v485
        %v487 = vand.u32 %v486, 4294901760
        %488 = vmatmul.mubr.f32.gmra.mrb[0].mxu0 %v487
        %v489 = vpop.f32.mrb[0].mxu0
        %v490 = vadd.f32 %v415, %v489
        %v491 = vpop.f32.mrb[0].mxu0
        %492 = vdwg.mxu0
        %493 = vmatprep.subr.mxu0 0.0
        %v494 = vand.u32 %v177, 4294901760
        %v495 = vsub.f32 %v177, %v494
        %v496 = vand.u32 %v495, 4294901760
        %497 = vmatpush1.msra.mxu0 %v496
        %498 = vmatprep.subr.mxu0 0.0
        %v499 = vand.u32 %v178, 4294901760
        %v500 = vsub.f32 %v178, %v499
        %v501 = vand.u32 %v500, 4294901760
        %502 = vmatpush1.msra.mxu0 %v501
        %503 = vmatprep.subr.mxu0 0.0
        %504 = vmatpush1.msra.mxu0 0.0
        %505 = vmatprep.subr.mxu0 0.0
        %506 = vmatpush1.msra.mxu0 0.0
        %507 = vmatprep.subr.mxu0 0.0
        %508 = vmatpush1.msra.mxu0 0.0
        %509 = vmatprep.subr.mxu0 0.0
        %510 = vmatpush1.msra.mxu0 0.0
        %511 = vmatprep.subr.mxu0 0.0
        %512 = vmatpush1.msra.mxu0 0.0
        %513 = vmatprep.subr.mxu0 0.0
        %514 = vmatpush1.msra.mxu0 0.0
        %515 = vmatprep.subr.mxu0 0.0
        %516 = vmatpush1.msra.mxu0 0.0
        %517 = vmatprep.subr.mxu0 0.0
        %518 = vmatpush1.msra.mxu0 0.0
        %519 = vmatprep.subr.mxu0 0.0
        %520 = vmatpush1.msra.mxu0 0.0
        %521 = vmatprep.subr.mxu0 0.0
        %522 = vmatpush1.msra.mxu0 0.0
        %523 = vmatprep.subr.mxu0 0.0
        %524 = vmatpush1.msra.mxu0 0.0
        %525 = vmatprep.subr.mxu0 0.0
        %526 = vmatpush1.msra.mxu0 0.0
        %527 = vmatprep.subr.mxu0 0.0
        %528 = vmatpush1.msra.mxu0 0.0
        %529 = vmatprep.subr.mxu0 0.0
        %530 = vmatpush1.msra.mxu0 0.0
        %531 = vmatprep.subr.mxu0 0.0
        %532 = vmatpush1.msra.mxu0 0.0
        %533 = vmatprep.subr.mxu0 0.0
        %534 = vmatpush1.msra.mxu0 0.0
        %535 = vmatprep.subr.mxu0 0.0
        %536 = vmatpush1.msra.mxu0 0.0
        %537 = vmatprep.subr.mxu0 0.0
        %538 = vmatpush1.msra.mxu0 0.0
        %539 = vmatprep.subr.mxu0 0.0
        %540 = vmatpush1.msra.mxu0 0.0
        %541 = vmatprep.subr.mxu0 0.0
        %542 = vmatpush1.msra.mxu0 0.0
        %543 = vmatprep.subr.mxu0 0.0
        %544 = vmatpush1.msra.mxu0 0.0
        %545 = vmatprep.subr.mxu0 0.0
        %546 = vmatpush1.msra.mxu0 0.0
        %547 = vmatprep.subr.mxu0 0.0
        %548 = vmatpush1.msra.mxu0 0.0
        %549 = vmatprep.subr.mxu0 0.0
        %550 = vmatpush1.msra.mxu0 0.0
        %551 = vmatprep.subr.mxu0 0.0
        %552 = vmatpush1.msra.mxu0 0.0
        %553 = vmatprep.subr.mxu0 0.0
        %554 = vmatpush1.msra.mxu0 0.0
        %555 = vmatprep.subr.mxu0 0.0
        %556 = vmatpush1.msra.mxu0 0.0
        %557 = vmatprep.subr.mxu0 0.0
        %558 = vmatpush1.msra.mxu0 0.0
        %559 = vmatprep.subr.mxu0 0.0
        %560 = vmatpush1.msra.mxu0 0.0
        %561 = vmatprep.subr.mxu0 0.0
        %562 = vmatpush1.msra.mxu0 0.0
        %563 = vmatprep.mubr.f32.mxu0 0.0
        %v564 = vand.u32 %v182, 4294901760
        %565 = vmatmul.mubr.f32.gmra.mrb[0].mxu0 %v564
        %v566 = vpop.f32.mrb[0].mxu0
        %v567 = vadd.f32 %v490, %v566
        %v568 = vpop.f32.mrb[0].mxu0
        %569 = vdwg.mxu0
        %570 = vmatprep.subr.mxu0 0.0
        %v571 = vand.u32 %v177, 4294901760
        %572 = vmatpush1.msra.mxu0 %v571
        %573 = vmatprep.subr.mxu0 0.0
        %v574 = vand.u32 %v178, 4294901760
        %575 = vmatpush1.msra.mxu0 %v574
        %576 = vmatprep.subr.mxu0 0.0
        %577 = vmatpush1.msra.mxu0 0.0
        %578 = vmatprep.subr.mxu0 0.0
        %579 = vmatpush1.msra.mxu0 0.0
        %580 = vmatprep.subr.mxu0 0.0
        %581 = vmatpush1.msra.mxu0 0.0
        %582 = vmatprep.subr.mxu0 0.0
        %583 = vmatpush1.msra.mxu0 0.0
        %584 = vmatprep.subr.mxu0 0.0
        %585 = vmatpush1.msra.mxu0 0.0
        %586 = vmatprep.subr.mxu0 0.0
        %587 = vmatpush1.msra.mxu0 0.0
        %588 = vmatprep.subr.mxu0 0.0
        %589 = vmatpush1.msra.mxu0 0.0
        %590 = vmatprep.subr.mxu0 0.0
        %591 = vmatpush1.msra.mxu0 0.0
        %592 = vmatprep.subr.mxu0 0.0
        %593 = vmatpush1.msra.mxu0 0.0
        %594 = vmatprep.subr.mxu0 0.0
        %595 = vmatpush1.msra.mxu0 0.0
        %596 = vmatprep.subr.mxu0 0.0
        %597 = vmatpush1.msra.mxu0 0.0
        %598 = vmatprep.subr.mxu0 0.0
        %599 = vmatpush1.msra.mxu0 0.0
        %600 = vmatprep.subr.mxu0 0.0
        %601 = vmatpush1.msra.mxu0 0.0
        %602 = vmatprep.subr.mxu0 0.0
        %603 = vmatpush1.msra.mxu0 0.0
        %604 = vmatprep.subr.mxu0 0.0
        %605 = vmatpush1.msra.mxu0 0.0
        %606 = vmatprep.subr.mxu0 0.0
        %607 = vmatpush1.msra.mxu0 0.0
        %608 = vmatprep.subr.mxu0 0.0
        %609 = vmatpush1.msra.mxu0 0.0
        %610 = vmatprep.subr.mxu0 0.0
        %611 = vmatpush1.msra.mxu0 0.0
        %612 = vmatprep.subr.mxu0 0.0
        %613 = vmatpush1.msra.mxu0 0.0
        %614 = vmatprep.subr.mxu0 0.0
        %615 = vmatpush1.msra.mxu0 0.0
        %616 = vmatprep.subr.mxu0 0.0
        %617 = vmatpush1.msra.mxu0 0.0
        %618 = vmatprep.subr.mxu0 0.0
        %619 = vmatpush1.msra.mxu0 0.0
        %620 = vmatprep.subr.mxu0 0.0
        %621 = vmatpush1.msra.mxu0 0.0
        %622 = vmatprep.subr.mxu0 0.0
        %623 = vmatpush1.msra.mxu0 0.0
        %624 = vmatprep.subr.mxu0 0.0
        %625 = vmatpush1.msra.mxu0 0.0
        %626 = vmatprep.subr.mxu0 0.0
        %627 = vmatpush1.msra.mxu0 0.0
        %628 = vmatprep.subr.mxu0 0.0
        %629 = vmatpush1.msra.mxu0 0.0
        %630 = vmatprep.subr.mxu0 0.0
        %631 = vmatpush1.msra.mxu0 0.0
        %632 = vmatprep.subr.mxu0 0.0
        %633 = vmatpush1.msra.mxu0 0.0
        %634 = vmatprep.subr.mxu0 0.0
        %635 = vmatpush1.msra.mxu0 0.0
        %636 = vmatprep.mubr.f32.mxu0 0.0
        %v637 = vand.u32 %v182, 4294901760
        %638 = vmatmul.mubr.f32.gmra.mrb[0].mxu0 %v637
        %v639 = vpop.f32.mrb[0].mxu0
        %v640 = vadd.f32 %v567, %v639
        %v641 = vpop.f32.mrb[0].mxu0
        %642 = vdwg.mxu0
        %v643 = vlaneseq
        %v644 = vand.u32 %v643, 127
        %vm645 = vcmp.eq.s32.totalorder %v644, 0
        %646 = vrot.lane.b32.xlu0 %v640, 1
        %v647 = vpop.permute.xlu0 %646
        %v648 = vsel %vm645, 0.0, %v647
        %vm649 = vcmp.eq.s32.totalorder %v644, 127
        %650 = vrot.lane.b32.xlu0 %v640, 127
        %v651 = vpop.permute.xlu0 %650
        %v652 = vsel %vm649, 0.0, %v651
        %v653 = vld [vmem:[#allocation5 + $0x8] sm:$0xff]
        %v654 = vld [vmem:[#allocation5 + $0x10] sm:$0xff]
        %vm655 = vcmask 31744
        %v657 = vsel %vm655, %v653, 0
        %v660 = vsel %vm655, %v654, 0
        %vm662 = vcmask 1043456
        %v664 = vsel %vm662, %v648, 0
        %666 = vmatprep.subr.mxu0 0.0
        %v667 = vand.u32 %v664, 4294901760
        %668 = vmatpush1.msra.mxu0 %v667
        %669 = vmatprep.subr.mxu0 0.0
        %670 = vmatpush1.msra.mxu0 0.0
        %671 = vmatprep.subr.mxu0 0.0
        %672 = vmatpush1.msra.mxu0 0.0
        %673 = vmatprep.subr.mxu0 0.0
        %674 = vmatpush1.msra.mxu0 0.0
        %675 = vmatprep.subr.mxu0 0.0
        %676 = vmatpush1.msra.mxu0 0.0
        %677 = vmatprep.subr.mxu0 0.0
        %678 = vmatpush1.msra.mxu0 0.0
        %679 = vmatprep.subr.mxu0 0.0
        %680 = vmatpush1.msra.mxu0 0.0
        %681 = vmatprep.subr.mxu0 0.0
        %682 = vmatpush1.msra.mxu0 0.0
        %683 = vmatprep.subr.mxu0 0.0
        %684 = vmatpush1.msra.mxu0 0.0
        %685 = vmatprep.subr.mxu0 0.0
        %686 = vmatpush1.msra.mxu0 0.0
        %687 = vmatprep.subr.mxu0 0.0
        %688 = vmatpush1.msra.mxu0 0.0
        %689 = vmatprep.subr.mxu0 0.0
        %690 = vmatpush1.msra.mxu0 0.0
        %691 = vmatprep.subr.mxu0 0.0
        %692 = vmatpush1.msra.mxu0 0.0
        %693 = vmatprep.subr.mxu0 0.0
        %694 = vmatpush1.msra.mxu0 0.0
        %695 = vmatprep.subr.mxu0 0.0
        %696 = vmatpush1.msra.mxu0 0.0
        %697 = vmatprep.subr.mxu0 0.0
        %698 = vmatpush1.msra.mxu0 0.0
        %699 = vmatprep.subr.mxu0 0.0
        %700 = vmatpush1.msra.mxu0 0.0
        %701 = vmatprep.subr.mxu0 0.0
        %702 = vmatpush1.msra.mxu0 0.0
        %703 = vmatprep.subr.mxu0 0.0
        %704 = vmatpush1.msra.mxu0 0.0
        %705 = vmatprep.subr.mxu0 0.0
        %706 = vmatpush1.msra.mxu0 0.0
        %707 = vmatprep.subr.mxu0 0.0
        %708 = vmatpush1.msra.mxu0 0.0
        %709 = vmatprep.subr.mxu0 0.0
        %710 = vmatpush1.msra.mxu0 0.0
        %711 = vmatprep.subr.mxu0 0.0
        %712 = vmatpush1.msra.mxu0 0.0
        %713 = vmatprep.subr.mxu0 0.0
        %714 = vmatpush1.msra.mxu0 0.0
        %715 = vmatprep.subr.mxu0 0.0
        %716 = vmatpush1.msra.mxu0 0.0
        %717 = vmatprep.subr.mxu0 0.0
        %718 = vmatpush1.msra.mxu0 0.0
        %719 = vmatprep.subr.mxu0 0.0
        %720 = vmatpush1.msra.mxu0 0.0
        %721 = vmatprep.subr.mxu0 0.0
        %722 = vmatpush1.msra.mxu0 0.0
        %723 = vmatprep.subr.mxu0 0.0
        %724 = vmatpush1.msra.mxu0 0.0
        %725 = vmatprep.subr.mxu0 0.0
        %726 = vmatpush1.msra.mxu0 0.0
        %727 = vmatprep.subr.mxu0 0.0
        %728 = vmatpush1.msra.mxu0 0.0
        %729 = vmatprep.subr.mxu0 0.0
        %730 = vmatpush1.msra.mxu0 0.0
        %731 = vmatprep.mubr.f32.mxu0 0.0
        %v732 = vand.u32 %v657, 4294901760
        %v733 = vsub.f32 %v657, %v732
        %v734 = vand.u32 %v733, 4294901760
        %v735 = vsub.f32 %v733, %v734
        %v736 = vand.u32 %v735, 4294901760
        %737 = vmatmul.mubr.f32.gmra.mrb[0].mxu0 %v736
        %v738 = vpop.f32.mrb[0].mxu0
        %v739 = vadd.f32 0.0, %v738
        %v740 = vpop.f32.mrb[0].mxu0
        %741 = vmatprep.mubr.f32.mxu0 0.0
        %v742 = vand.u32 %v660, 4294901760
        %v743 = vsub.f32 %v660, %v742
        %v744 = vand.u32 %v743, 4294901760
        %v745 = vsub.f32 %v743, %v744
        %v746 = vand.u32 %v745, 4294901760
        %747 = vmatmul.mubr.f32.gmra.mrb[0].mxu0 %v746
        %v748 = vpop.f32.mrb[0].mxu0
        %v749 = vadd.f32 0.0, %v748
        %v750 = vpop.f32.mrb[0].mxu0
        %751 = vdwg.mxu0
        %752 = vmatprep.subr.mxu0 0.0
        %v753 = vand.u32 %v664, 4294901760
        %v754 = vsub.f32 %v664, %v753
        %v755 = vand.u32 %v754, 4294901760
        %v756 = vsub.f32 %v754, %v755
        %v757 = vand.u32 %v756, 4294901760
        %758 = vmatpush1.msra.mxu0 %v757
        %759 = vmatprep.subr.mxu0 0.0
        %760 = vmatpush1.msra.mxu0 0.0
        %761 = vmatprep.subr.mxu0 0.0
        %762 = vmatpush1.msra.mxu0 0.0
        %763 = vmatprep.subr.mxu0 0.0
        %764 = vmatpush1.msra.mxu0 0.0
        %765 = vmatprep.subr.mxu0 0.0
        %766 = vmatpush1.msra.mxu0 0.0
        %767 = vmatprep.subr.mxu0 0.0
        %768 = vmatpush1.msra.mxu0 0.0
        %769 = vmatprep.subr.mxu0 0.0
        %770 = vmatpush1.msra.mxu0 0.0
        %771 = vmatprep.subr.mxu0 0.0
        %772 = vmatpush1.msra.mxu0 0.0
        %773 = vmatprep.subr.mxu0 0.0
        %774 = vmatpush1.msra.mxu0 0.0
        %775 = vmatprep.subr.mxu0 0.0
        %776 = vmatpush1.msra.mxu0 0.0
        %777 = vmatprep.subr.mxu0 0.0
        %778 = vmatpush1.msra.mxu0 0.0
        %779 = vmatprep.subr.mxu0 0.0
        %780 = vmatpush1.msra.mxu0 0.0
        %781 = vmatprep.subr.mxu0 0.0
        %782 = vmatpush1.msra.mxu0 0.0
        %783 = vmatprep.subr.mxu0 0.0
        %784 = vmatpush1.msra.mxu0 0.0
        %785 = vmatprep.subr.mxu0 0.0
        %786 = vmatpush1.msra.mxu0 0.0
        %787 = vmatprep.subr.mxu0 0.0
        %788 = vmatpush1.msra.mxu0 0.0
        %789 = vmatprep.subr.mxu0 0.0
        %790 = vmatpush1.msra.mxu0 0.0
        %791 = vmatprep.subr.mxu0 0.0
        %792 = vmatpush1.msra.mxu0 0.0
        %793 = vmatprep.subr.mxu0 0.0
        %794 = vmatpush1.msra.mxu0 0.0
        %795 = vmatprep.subr.mxu0 0.0
        %796 = vmatpush1.msra.mxu0 0.0
        %797 = vmatprep.subr.mxu0 0.0
        %798 = vmatpush1.msra.mxu0 0.0
        %799 = vmatprep.subr.mxu0 0.0
        %800 = vmatpush1.msra.mxu0 0.0
        %801 = vmatprep.subr.mxu0 0.0
        %802 = vmatpush1.msra.mxu0 0.0
        %803 = vmatprep.subr.mxu0 0.0
        %804 = vmatpush1.msra.mxu0 0.0
        %805 = vmatprep.subr.mxu0 0.0
        %806 = vmatpush1.msra.mxu0 0.0
        %807 = vmatprep.subr.mxu0 0.0
        %808 = vmatpush1.msra.mxu0 0.0
        %809 = vmatprep.subr.mxu0 0.0
        %810 = vmatpush1.msra.mxu0 0.0
        %811 = vmatprep.subr.mxu0 0.0
        %812 = vmatpush1.msra.mxu0 0.0
        %813 = vmatprep.subr.mxu0 0.0
        %814 = vmatpush1.msra.mxu0 0.0
        %815 = vmatprep.subr.mxu0 0.0
        %816 = vmatpush1.msra.mxu0 0.0
        %817 = vmatprep.subr.mxu0 0.0
        %818 = vmatpush1.msra.mxu0 0.0
        %819 = vmatprep.subr.mxu0 0.0
        %820 = vmatpush1.msra.mxu0 0.0
        %821 = vmatprep.mubr.f32.mxu0 0.0
        %v822 = vand.u32 %v657, 4294901760
        %823 = vmatmul.mubr.f32.gmra.mrb[0].mxu0 %v822
        %v824 = vpop.f32.mrb[0].mxu0
        %v825 = vadd.f32 %v739, %v824
        %v826 = vpop.f32.mrb[0].mxu0
        %827 = vmatprep.mubr.f32.mxu0 0.0
        %v828 = vand.u32 %v660, 4294901760
        %829 = vmatmul.mubr.f32.gmra.mrb[0].mxu0 %v828
        %v830 = vpop.f32.mrb[0].mxu0
        %v831 = vadd.f32 %v749, %v830
        %v832 = vpop.f32.mrb[0].mxu0
        %833 = vdwg.mxu0
        %834 = vmatprep.subr.mxu0 0.0
        %v835 = vand.u32 %v664, 4294901760
        %v836 = vsub.f32 %v664, %v835
        %837 = vmatpush1.msra.mxu0 %v836
        %838 = vmatprep.subr.mxu0 0.0
        %839 = vmatpush1.msra.mxu0 0.0
        %840 = vmatprep.subr.mxu0 0.0
        %841 = vmatpush1.msra.mxu0 0.0
        %842 = vmatprep.subr.mxu0 0.0
        %843 = vmatpush1.msra.mxu0 0.0
        %844 = vmatprep.subr.mxu0 0.0
        %845 = vmatpush1.msra.mxu0 0.0
        %846 = vmatprep.subr.mxu0 0.0
        %847 = vmatpush1.msra.mxu0 0.0
        %848 = vmatprep.subr.mxu0 0.0
        %849 = vmatpush1.msra.mxu0 0.0
        %850 = vmatprep.subr.mxu0 0.0
        %851 = vmatpush1.msra.mxu0 0.0
        %852 = vmatprep.subr.mxu0 0.0
        %853 = vmatpush1.msra.mxu0 0.0
        %854 = vmatprep.subr.mxu0 0.0
        %855 = vmatpush1.msra.mxu0 0.0
        %856 = vmatprep.subr.mxu0 0.0
        %857 = vmatpush1.msra.mxu0 0.0
        %858 = vmatprep.subr.mxu0 0.0
        %859 = vmatpush1.msra.mxu0 0.0
        %860 = vmatprep.subr.mxu0 0.0
        %861 = vmatpush1.msra.mxu0 0.0
        %862 = vmatprep.subr.mxu0 0.0
        %863 = vmatpush1.msra.mxu0 0.0
        %864 = vmatprep.subr.mxu0 0.0
        %865 = vmatpush1.msra.mxu0 0.0
        %866 = vmatprep.subr.mxu0 0.0
        %867 = vmatpush1.msra.mxu0 0.0
        %868 = vmatprep.subr.mxu0 0.0
        %869 = vmatpush1.msra.mxu0 0.0
        %870 = vmatprep.subr.mxu0 0.0
        %871 = vmatpush1.msra.mxu0 0.0
        %872 = vmatprep.subr.mxu0 0.0
        %873 = vmatpush1.msra.mxu0 0.0
        %874 = vmatprep.subr.mxu0 0.0
        %875 = vmatpush1.msra.mxu0 0.0
        %876 = vmatprep.subr.mxu0 0.0
        %877 = vmatpush1.msra.mxu0 0.0
        %878 = vmatprep.subr.mxu0 0.0
        %879 = vmatpush1.msra.mxu0 0.0
        %880 = vmatprep.subr.mxu0 0.0
        %881 = vmatpush1.msra.mxu0 0.0
        %882 = vmatprep.subr.mxu0 0.0
        %883 = vmatpush1.msra.mxu0 0.0
        %884 = vmatprep.subr.mxu0 0.0
        %885 = vmatpush1.msra.mxu0 0.0
        %886 = vmatprep.subr.mxu0 0.0
        %887 = vmatpush1.msra.mxu0 0.0
        %888 = vmatprep.subr.mxu0 0.0
        %889 = vmatpush1.msra.mxu0 0.0
        %890 = vmatprep.subr.mxu0 0.0
        %891 = vmatpush1.msra.mxu0 0.0
        %892 = vmatprep.subr.mxu0 0.0
        %893 = vmatpush1.msra.mxu0 0.0
        %894 = vmatprep.subr.mxu0 0.0
        %895 = vmatpush1.msra.mxu0 0.0
        %896 = vmatprep.subr.mxu0 0.0
        %897 = vmatpush1.msra.mxu0 0.0
        %898 = vmatprep.subr.mxu0 0.0
        %899 = vmatpush1.msra.mxu0 0.0
        %900 = vmatprep.mubr.f32.mxu0 0.0
        %v901 = vand.u32 %v657, 4294901760
        %v902 = vsub.f32 %v657, %v901
        %903 = vmatmul.mubr.f32.gmra.mrb[0].mxu0 %v902
        %v904 = vpop.f32.mrb[0].mxu0
        %v905 = vadd.f32 %v825, %v904
        %v906 = vpop.f32.mrb[0].mxu0
        %907 = vmatprep.mubr.f32.mxu0 0.0
        %v908 = vand.u32 %v660, 4294901760
        %v909 = vsub.f32 %v660, %v908
        %910 = vmatmul.mubr.f32.gmra.mrb[0].mxu0 %v909
        %v911 = vpop.f32.mrb[0].mxu0
        %v912 = vadd.f32 %v831, %v911
        %v913 = vpop.f32.mrb[0].mxu0
        %914 = vdwg.mxu0
        %915 = vmatprep.subr.mxu0 0.0
        %v916 = vand.u32 %v664, 4294901760
        %917 = vmatpush1.msra.mxu0 %v916
        %918 = vmatprep.subr.mxu0 0.0
        %919 = vmatpush1.msra.mxu0 0.0
        %920 = vmatprep.subr.mxu0 0.0
        %921 = vmatpush1.msra.mxu0 0.0
        %922 = vmatprep.subr.mxu0 0.0
        %923 = vmatpush1.msra.mxu0 0.0
        %924 = vmatprep.subr.mxu0 0.0
        %925 = vmatpush1.msra.mxu0 0.0
        %926 = vmatprep.subr.mxu0 0.0
        %927 = vmatpush1.msra.mxu0 0.0
        %928 = vmatprep.subr.mxu0 0.0
        %929 = vmatpush1.msra.mxu0 0.0
        %930 = vmatprep.subr.mxu0 0.0
        %931 = vmatpush1.msra.mxu0 0.0
        %932 = vmatprep.subr.mxu0 0.0
        %933 = vmatpush1.msra.mxu0 0.0
        %934 = vmatprep.subr.mxu0 0.0
        %935 = vmatpush1.msra.mxu0 0.0
        %936 = vmatprep.subr.mxu0 0.0
        %937 = vmatpush1.msra.mxu0 0.0
        %938 = vmatprep.subr.mxu0 0.0
        %939 = vmatpush1.msra.mxu0 0.0
        %940 = vmatprep.subr.mxu0 0.0
        %941 = vmatpush1.msra.mxu0 0.0
        %942 = vmatprep.subr.mxu0 0.0
        %943 = vmatpush1.msra.mxu0 0.0
        %944 = vmatprep.subr.mxu0 0.0
        %945 = vmatpush1.msra.mxu0 0.0
        %946 = vmatprep.subr.mxu0 0.0
        %947 = vmatpush1.msra.mxu0 0.0
        %948 = vmatprep.subr.mxu0 0.0
        %949 = vmatpush1.msra.mxu0 0.0
        %950 = vmatprep.subr.mxu0 0.0
        %951 = vmatpush1.msra.mxu0 0.0
        %952 = vmatprep.subr.mxu0 0.0
        %953 = vmatpush1.msra.mxu0 0.0
        %954 = vmatprep.subr.mxu0 0.0
        %955 = vmatpush1.msra.mxu0 0.0
        %956 = vmatprep.subr.mxu0 0.0
        %957 = vmatpush1.msra.mxu0 0.0
        %958 = vmatprep.subr.mxu0 0.0
        %959 = vmatpush1.msra.mxu0 0.0
        %960 = vmatprep.subr.mxu0 0.0
        %961 = vmatpush1.msra.mxu0 0.0
        %962 = vmatprep.subr.mxu0 0.0
        %963 = vmatpush1.msra.mxu0 0.0
        %964 = vmatprep.subr.mxu0 0.0
        %965 = vmatpush1.msra.mxu0 0.0
        %966 = vmatprep.subr.mxu0 0.0
        %967 = vmatpush1.msra.mxu0 0.0
        %968 = vmatprep.subr.mxu0 0.0
        %969 = vmatpush1.msra.mxu0 0.0
        %970 = vmatprep.subr.mxu0 0.0
        %971 = vmatpush1.msra.mxu0 0.0
        %972 = vmatprep.subr.mxu0 0.0
        %973 = vmatpush1.msra.mxu0 0.0
        %974 = vmatprep.subr.mxu0 0.0
        %975 = vmatpush1.msra.mxu0 0.0
        %976 = vmatprep.subr.mxu0 0.0
        %977 = vmatpush1.msra.mxu0 0.0
        %978 = vmatprep.subr.mxu0 0.0
        %979 = vmatpush1.msra.mxu0 0.0
        %980 = vmatprep.mubr.f32.mxu0 0.0
        %v981 = vand.u32 %v657, 4294901760
        %v982 = vsub.f32 %v657, %v981
        %v983 = vand.u32 %v982, 4294901760
        %984 = vmatmul.mubr.f32.gmra.mrb[0].mxu0 %v983
        %v985 = vpop.f32.mrb[0].mxu0
        %v986 = vadd.f32 %v905, %v985
        %v987 = vpop.f32.mrb[0].mxu0
        %988 = vmatprep.mubr.f32.mxu0 0.0
        %v989 = vand.u32 %v660, 4294901760
        %v990 = vsub.f32 %v660, %v989
        %v991 = vand.u32 %v990, 4294901760
        %992 = vmatmul.mubr.f32.gmra.mrb[0].mxu0 %v991
        %v993 = vpop.f32.mrb[0].mxu0
        %v994 = vadd.f32 %v912, %v993
        %v995 = vpop.f32.mrb[0].mxu0
        %996 = vdwg.mxu0
        %997 = vmatprep.subr.mxu0 0.0
        %v998 = vand.u32 %v664, 4294901760
        %v999 = vsub.f32 %v664, %v998
        %v1000 = vand.u32 %v999, 4294901760
        %1001 = vmatpush1.msra.mxu0 %v1000
        %1002 = vmatprep.subr.mxu0 0.0
        %1003 = vmatpush1.msra.mxu0 0.0
        %1004 = vmatprep.subr.mxu0 0.0
        %1005 = vmatpush1.msra.mxu0 0.0
        %1006 = vmatprep.subr.mxu0 0.0
        %1007 = vmatpush1.msra.mxu0 0.0
        %1008 = vmatprep.subr.mxu0 0.0
        %1009 = vmatpush1.msra.mxu0 0.0
        %1010 = vmatprep.subr.mxu0 0.0
        %1011 = vmatpush1.msra.mxu0 0.0
        %1012 = vmatprep.subr.mxu0 0.0
        %1013 = vmatpush1.msra.mxu0 0.0
        %1014 = vmatprep.subr.mxu0 0.0
        %1015 = vmatpush1.msra.mxu0 0.0
        %1016 = vmatprep.subr.mxu0 0.0
        %1017 = vmatpush1.msra.mxu0 0.0
        %1018 = vmatprep.subr.mxu0 0.0
        %1019 = vmatpush1.msra.mxu0 0.0
        %1020 = vmatprep.subr.mxu0 0.0
        %1021 = vmatpush1.msra.mxu0 0.0
        %1022 = vmatprep.subr.mxu0 0.0
        %1023 = vmatpush1.msra.mxu0 0.0
        %1024 = vmatprep.subr.mxu0 0.0
        %1025 = vmatpush1.msra.mxu0 0.0
        %1026 = vmatprep.subr.mxu0 0.0
        %1027 = vmatpush1.msra.mxu0 0.0
        %1028 = vmatprep.subr.mxu0 0.0
        %1029 = vmatpush1.msra.mxu0 0.0
        %1030 = vmatprep.subr.mxu0 0.0
        %1031 = vmatpush1.msra.mxu0 0.0
        %1032 = vmatprep.subr.mxu0 0.0
        %1033 = vmatpush1.msra.mxu0 0.0
        %1034 = vmatprep.subr.mxu0 0.0
        %1035 = vmatpush1.msra.mxu0 0.0
        %1036 = vmatprep.subr.mxu0 0.0
        %1037 = vmatpush1.msra.mxu0 0.0
        %1038 = vmatprep.subr.mxu0 0.0
        %1039 = vmatpush1.msra.mxu0 0.0
        %1040 = vmatprep.subr.mxu0 0.0
        %1041 = vmatpush1.msra.mxu0 0.0
        %1042 = vmatprep.subr.mxu0 0.0
        %1043 = vmatpush1.msra.mxu0 0.0
        %1044 = vmatprep.subr.mxu0 0.0
        %1045 = vmatpush1.msra.mxu0 0.0
        %1046 = vmatprep.subr.mxu0 0.0
        %1047 = vmatpush1.msra.mxu0 0.0
        %1048 = vmatprep.subr.mxu0 0.0
        %1049 = vmatpush1.msra.mxu0 0.0
        %1050 = vmatprep.subr.mxu0 0.0
        %1051 = vmatpush1.msra.mxu0 0.0
        %1052 = vmatprep.subr.mxu0 0.0
        %1053 = vmatpush1.msra.mxu0 0.0
        %1054 = vmatprep.subr.mxu0 0.0
        %1055 = vmatpush1.msra.mxu0 0.0
        %1056 = vmatprep.subr.mxu0 0.0
        %1057 = vmatpush1.msra.mxu0 0.0
        %1058 = vmatprep.subr.mxu0 0.0
        %1059 = vmatpush1.msra.mxu0 0.0
        %1060 = vmatprep.subr.mxu0 0.0
        %1061 = vmatpush1.msra.mxu0 0.0
        %1062 = vmatprep.subr.mxu0 0.0
        %1063 = vmatpush1.msra.mxu0 0.0
        %1064 = vmatprep.mubr.f32.mxu0 0.0
        %v1065 = vand.u32 %v657, 4294901760
        %1066 = vmatmul.mubr.f32.gmra.mrb[0].mxu0 %v1065
        %v1067 = vpop.f32.mrb[0].mxu0
        %v1068 = vadd.f32 %v986, %v1067
        %v1069 = vpop.f32.mrb[0].mxu0
        %1070 = vmatprep.mubr.f32.mxu0 0.0
        %v1071 = vand.u32 %v660, 4294901760
        %1072 = vmatmul.mubr.f32.gmra.mrb[0].mxu0 %v1071
        %v1073 = vpop.f32.mrb[0].mxu0
        %v1074 = vadd.f32 %v994, %v1073
        %v1075 = vpop.f32.mrb[0].mxu0
        %1076 = vdwg.mxu0
        %1077 = vmatprep.subr.mxu0 0.0
        %v1078 = vand.u32 %v664, 4294901760
        %1079 = vmatpush1.msra.mxu0 %v1078
        %1080 = vmatprep.subr.mxu0 0.0
        %1081 = vmatpush1.msra.mxu0 0.0
        %1082 = vmatprep.subr.mxu0 0.0
        %1083 = vmatpush1.msra.mxu0 0.0
        %1084 = vmatprep.subr.mxu0 0.0
        %1085 = vmatpush1.msra.mxu0 0.0
        %1086 = vmatprep.subr.mxu0 0.0
        %1087 = vmatpush1.msra.mxu0 0.0
        %1088 = vmatprep.subr.mxu0 0.0
        %1089 = vmatpush1.msra.mxu0 0.0
        %1090 = vmatprep.subr.mxu0 0.0
        %1091 = vmatpush1.msra.mxu0 0.0
        %1092 = vmatprep.subr.mxu0 0.0
        %1093 = vmatpush1.msra.mxu0 0.0
        %1094 = vmatprep.subr.mxu0 0.0
        %1095 = vmatpush1.msra.mxu0 0.0
        %1096 = vmatprep.subr.mxu0 0.0
        %1097 = vmatpush1.msra.mxu0 0.0
        %1098 = vmatprep.subr.mxu0 0.0
        %1099 = vmatpush1.msra.mxu0 0.0
        %1100 = vmatprep.subr.mxu0 0.0
        %1101 = vmatpush1.msra.mxu0 0.0
        %1102 = vmatprep.subr.mxu0 0.0
        %1103 = vmatpush1.msra.mxu0 0.0
        %1104 = vmatprep.subr.mxu0 0.0
        %1105 = vmatpush1.msra.mxu0 0.0
        %1106 = vmatprep.subr.mxu0 0.0
        %1107 = vmatpush1.msra.mxu0 0.0
        %1108 = vmatprep.subr.mxu0 0.0
        %1109 = vmatpush1.msra.mxu0 0.0
        %1110 = vmatprep.subr.mxu0 0.0
        %1111 = vmatpush1.msra.mxu0 0.0
        %1112 = vmatprep.subr.mxu0 0.0
        %1113 = vmatpush1.msra.mxu0 0.0
        %1114 = vmatprep.subr.mxu0 0.0
        %1115 = vmatpush1.msra.mxu0 0.0
        %1116 = vmatprep.subr.mxu0 0.0
        %1117 = vmatpush1.msra.mxu0 0.0
        %1118 = vmatprep.subr.mxu0 0.0
        %1119 = vmatpush1.msra.mxu0 0.0
        %1120 = vmatprep.subr.mxu0 0.0
        %1121 = vmatpush1.msra.mxu0 0.0
        %1122 = vmatprep.subr.mxu0 0.0
        %1123 = vmatpush1.msra.mxu0 0.0
        %1124 = vmatprep.subr.mxu0 0.0
        %1125 = vmatpush1.msra.mxu0 0.0
        %1126 = vmatprep.subr.mxu0 0.0
        %1127 = vmatpush1.msra.mxu0 0.0
        %1128 = vmatprep.subr.mxu0 0.0
        %1129 = vmatpush1.msra.mxu0 0.0
        %1130 = vmatprep.subr.mxu0 0.0
        %1131 = vmatpush1.msra.mxu0 0.0
        %1132 = vmatprep.subr.mxu0 0.0
        %1133 = vmatpush1.msra.mxu0 0.0
        %1134 = vmatprep.subr.mxu0 0.0
        %1135 = vmatpush1.msra.mxu0 0.0
        %1136 = vmatprep.subr.mxu0 0.0
        %1137 = vmatpush1.msra.mxu0 0.0
        %1138 = vmatprep.subr.mxu0 0.0
        %1139 = vmatpush1.msra.mxu0 0.0
        %1140 = vmatprep.subr.mxu0 0.0
        %1141 = vmatpush1.msra.mxu0 0.0
        %1142 = vmatprep.mubr.f32.mxu0 0.0
        %v1143 = vand.u32 %v657, 4294901760
        %1144 = vmatmul.mubr.f32.gmra.mrb[0].mxu0 %v1143
        %v1145 = vpop.f32.mrb[0].mxu0
        %v1146 = vadd.f32 %v1068, %v1145
        %v1147 = vpop.f32.mrb[0].mxu0
        %1148 = vmatprep.mubr.f32.mxu0 0.0
        %v1149 = vand.u32 %v660, 4294901760
        %1150 = vmatmul.mubr.f32.gmra.mrb[0].mxu0 %v1149
        %v1151 = vpop.f32.mrb[0].mxu0
        %v1152 = vadd.f32 %v1074, %v1151
        %v1153 = vpop.f32.mrb[0].mxu0
        %1154 = vdwg.mxu0
        %1155 = vrot.lane.b32.xlu0 %v653, 124
        %v1156 = vpop.permute.xlu0 %1155
        %1157 = vrot.lane.b32.xlu0 %v654, 124
        %v1158 = vpop.permute.xlu0 %1157
        %v1159 = vsel %vm655, %v1156, 0
        %v1161 = vsel %vm655, %v1158, 0
        %v1164 = vsel %vm662, %v640, 0
        %1166 = vmatprep.subr.mxu0 0.0
        %v1167 = vand.u32 %v1164, 4294901760
        %1168 = vmatpush1.msra.mxu0 %v1167
        %1169 = vmatprep.subr.mxu0 0.0
        %1170 = vmatpush1.msra.mxu0 0.0
        %1171 = vmatprep.subr.mxu0 0.0
        %1172 = vmatpush1.msra.mxu0 0.0
        %1173 = vmatprep.subr.mxu0 0.0
        %1174 = vmatpush1.msra.mxu0 0.0
        %1175 = vmatprep.subr.mxu0 0.0
        %1176 = vmatpush1.msra.mxu0 0.0
        %1177 = vmatprep.subr.mxu0 0.0
        %1178 = vmatpush1.msra.mxu0 0.0
        %1179 = vmatprep.subr.mxu0 0.0
        %1180 = vmatpush1.msra.mxu0 0.0
        %1181 = vmatprep.subr.mxu0 0.0
        %1182 = vmatpush1.msra.mxu0 0.0
        %1183 = vmatprep.subr.mxu0 0.0
        %1184 = vmatpush1.msra.mxu0 0.0
        %1185 = vmatprep.subr.mxu0 0.0
        %1186 = vmatpush1.msra.mxu0 0.0
        %1187 = vmatprep.subr.mxu0 0.0
        %1188 = vmatpush1.msra.mxu0 0.0
        %1189 = vmatprep.subr.mxu0 0.0
        %1190 = vmatpush1.msra.mxu0 0.0
        %1191 = vmatprep.subr.mxu0 0.0
        %1192 = vmatpush1.msra.mxu0 0.0
        %1193 = vmatprep.subr.mxu0 0.0
        %1194 = vmatpush1.msra.mxu0 0.0
        %1195 = vmatprep.subr.mxu0 0.0
        %1196 = vmatpush1.msra.mxu0 0.0
        %1197 = vmatprep.subr.mxu0 0.0
        %1198 = vmatpush1.msra.mxu0 0.0
        %1199 = vmatprep.subr.mxu0 0.0
        %1200 = vmatpush1.msra.mxu0 0.0
        %1201 = vmatprep.subr.mxu0 0.0
        %1202 = vmatpush1.msra.mxu0 0.0
        %1203 = vmatprep.subr.mxu0 0.0
        %1204 = vmatpush1.msra.mxu0 0.0
        %1205 = vmatprep.subr.mxu0 0.0
        %1206 = vmatpush1.msra.mxu0 0.0
        %1207 = vmatprep.subr.mxu0 0.0
        %1208 = vmatpush1.msra.mxu0 0.0
        %1209 = vmatprep.subr.mxu0 0.0
        %1210 = vmatpush1.msra.mxu0 0.0
        %1211 = vmatprep.subr.mxu0 0.0
        %1212 = vmatpush1.msra.mxu0 0.0
        %1213 = vmatprep.subr.mxu0 0.0
        %1214 = vmatpush1.msra.mxu0 0.0
        %1215 = vmatprep.subr.mxu0 0.0
        %1216 = vmatpush1.msra.mxu0 0.0
        %1217 = vmatprep.subr.mxu0 0.0
        %1218 = vmatpush1.msra.mxu0 0.0
        %1219 = vmatprep.subr.mxu0 0.0
        %1220 = vmatpush1.msra.mxu0 0.0
        %1221 = vmatprep.subr.mxu0 0.0
        %1222 = vmatpush1.msra.mxu0 0.0
        %1223 = vmatprep.subr.mxu0 0.0
        %1224 = vmatpush1.msra.mxu0 0.0
        %1225 = vmatprep.subr.mxu0 0.0
        %1226 = vmatpush1.msra.mxu0 0.0
        %1227 = vmatprep.subr.mxu0 0.0
        %1228 = vmatpush1.msra.mxu0 0.0
        %1229 = vmatprep.subr.mxu0 0.0
        %1230 = vmatpush1.msra.mxu0 0.0
        %1231 = vmatprep.mubr.f32.mxu0 0.0
        %v1232 = vand.u32 %v1159, 4294901760
        %v1233 = vsub.f32 %v1159, %v1232
        %v1234 = vand.u32 %v1233, 4294901760
        %v1235 = vsub.f32 %v1233, %v1234
        %v1236 = vand.u32 %v1235, 4294901760
        %1237 = vmatmul.mubr.f32.gmra.mrb[0].mxu0 %v1236
        %v1238 = vpop.f32.mrb[0].mxu0
        %v1239 = vadd.f32 %v1146, %v1238
        %v1240 = vpop.f32.mrb[0].mxu0
        %1241 = vmatprep.mubr.f32.mxu0 0.0
        %v1242 = vand.u32 %v1161, 4294901760
        %v1243 = vsub.f32 %v1161, %v1242
        %v1244 = vand.u32 %v1243, 4294901760
        %v1245 = vsub.f32 %v1243, %v1244
        %v1246 = vand.u32 %v1245, 4294901760
        %1247 = vmatmul.mubr.f32.gmra.mrb[0].mxu0 %v1246
        %v1248 = vpop.f32.mrb[0].mxu0
        %v1249 = vadd.f32 %v1152, %v1248
        %v1250 = vpop.f32.mrb[0].mxu0
        %1251 = vdwg.mxu0
        %1252 = vmatprep.subr.mxu0 0.0
        %v1253 = vand.u32 %v1164, 4294901760
        %v1254 = vsub.f32 %v1164, %v1253
        %v1255 = vand.u32 %v1254, 4294901760
        %v1256 = vsub.f32 %v1254, %v1255
        %v1257 = vand.u32 %v1256, 4294901760
        %1258 = vmatpush1.msra.mxu0 %v1257
        %1259 = vmatprep.subr.mxu0 0.0
        %1260 = vmatpush1.msra.mxu0 0.0
        %1261 = vmatprep.subr.mxu0 0.0
        %1262 = vmatpush1.msra.mxu0 0.0
        %1263 = vmatprep.subr.mxu0 0.0
        %1264 = vmatpush1.msra.mxu0 0.0
        %1265 = vmatprep.subr.mxu0 0.0
        %1266 = vmatpush1.msra.mxu0 0.0
        %1267 = vmatprep.subr.mxu0 0.0
        %1268 = vmatpush1.msra.mxu0 0.0
        %1269 = vmatprep.subr.mxu0 0.0
        %1270 = vmatpush1.msra.mxu0 0.0
        %1271 = vmatprep.subr.mxu0 0.0
        %1272 = vmatpush1.msra.mxu0 0.0
        %1273 = vmatprep.subr.mxu0 0.0
        %1274 = vmatpush1.msra.mxu0 0.0
        %1275 = vmatprep.subr.mxu0 0.0
        %1276 = vmatpush1.msra.mxu0 0.0
        %1277 = vmatprep.subr.mxu0 0.0
        %1278 = vmatpush1.msra.mxu0 0.0
        %1279 = vmatprep.subr.mxu0 0.0
        %1280 = vmatpush1.msra.mxu0 0.0
        %1281 = vmatprep.subr.mxu0 0.0
        %1282 = vmatpush1.msra.mxu0 0.0
        %1283 = vmatprep.subr.mxu0 0.0
        %1284 = vmatpush1.msra.mxu0 0.0
        %1285 = vmatprep.subr.mxu0 0.0
        %1286 = vmatpush1.msra.mxu0 0.0
        %1287 = vmatprep.subr.mxu0 0.0
        %1288 = vmatpush1.msra.mxu0 0.0
        %1289 = vmatprep.subr.mxu0 0.0
        %1290 = vmatpush1.msra.mxu0 0.0
        %1291 = vmatprep.subr.mxu0 0.0
        %1292 = vmatpush1.msra.mxu0 0.0
        %1293 = vmatprep.subr.mxu0 0.0
        %1294 = vmatpush1.msra.mxu0 0.0
        %1295 = vmatprep.subr.mxu0 0.0
        %1296 = vmatpush1.msra.mxu0 0.0
        %1297 = vmatprep.subr.mxu0 0.0
        %1298 = vmatpush1.msra.mxu0 0.0
        %1299 = vmatprep.subr.mxu0 0.0
        %1300 = vmatpush1.msra.mxu0 0.0
        %1301 = vmatprep.subr.mxu0 0.0
        %1302 = vmatpush1.msra.mxu0 0.0
        %1303 = vmatprep.subr.mxu0 0.0
        %1304 = vmatpush1.msra.mxu0 0.0
        %1305 = vmatprep.subr.mxu0 0.0
        %1306 = vmatpush1.msra.mxu0 0.0
        %1307 = vmatprep.subr.mxu0 0.0
        %1308 = vmatpush1.msra.mxu0 0.0
        %1309 = vmatprep.subr.mxu0 0.0
        %1310 = vmatpush1.msra.mxu0 0.0
        %1311 = vmatprep.subr.mxu0 0.0
        %1312 = vmatpush1.msra.mxu0 0.0
        %1313 = vmatprep.subr.mxu0 0.0
        %1314 = vmatpush1.msra.mxu0 0.0
        %1315 = vmatprep.subr.mxu0 0.0
        %1316 = vmatpush1.msra.mxu0 0.0
        %1317 = vmatprep.subr.mxu0 0.0
        %1318 = vmatpush1.msra.mxu0 0.0
        %1319 = vmatprep.subr.mxu0 0.0
        %1320 = vmatpush1.msra.mxu0 0.0
        %1321 = vmatprep.mubr.f32.mxu0 0.0
        %v1322 = vand.u32 %v1159, 4294901760
        %1323 = vmatmul.mubr.f32.gmra.mrb[0].mxu0 %v1322
        %v1324 = vpop.f32.mrb[0].mxu0
        %v1325 = vadd.f32 %v1239, %v1324
        %v1326 = vpop.f32.mrb[0].mxu0
        %1327 = vmatprep.mubr.f32.mxu0 0.0
        %v1328 = vand.u32 %v1161, 4294901760
        %1329 = vmatmul.mubr.f32.gmra.mrb[0].mxu0 %v1328
        %v1330 = vpop.f32.mrb[0].mxu0
        %v1331 = vadd.f32 %v1249, %v1330
        %v1332 = vpop.f32.mrb[0].mxu0
        %1333 = vdwg.mxu0
        %1334 = vmatprep.subr.mxu0 0.0
        %v1335 = vand.u32 %v1164, 4294901760
        %v1336 = vsub.f32 %v1164, %v1335
        %1337 = vmatpush1.msra.mxu0 %v1336
        %1338 = vmatprep.subr.mxu0 0.0
        %1339 = vmatpush1.msra.mxu0 0.0
        %1340 = vmatprep.subr.mxu0 0.0
        %1341 = vmatpush1.msra.mxu0 0.0
        %1342 = vmatprep.subr.mxu0 0.0
        %1343 = vmatpush1.msra.mxu0 0.0
        %1344 = vmatprep.subr.mxu0 0.0
        %1345 = vmatpush1.msra.mxu0 0.0
        %1346 = vmatprep.subr.mxu0 0.0
        %1347 = vmatpush1.msra.mxu0 0.0
        %1348 = vmatprep.subr.mxu0 0.0
        %1349 = vmatpush1.msra.mxu0 0.0
        %1350 = vmatprep.subr.mxu0 0.0
        %1351 = vmatpush1.msra.mxu0 0.0
        %1352 = vmatprep.subr.mxu0 0.0
        %1353 = vmatpush1.msra.mxu0 0.0
        %1354 = vmatprep.subr.mxu0 0.0
        %1355 = vmatpush1.msra.mxu0 0.0
        %1356 = vmatprep.subr.mxu0 0.0
        %1357 = vmatpush1.msra.mxu0 0.0
        %1358 = vmatprep.subr.mxu0 0.0
        %1359 = vmatpush1.msra.mxu0 0.0
        %1360 = vmatprep.subr.mxu0 0.0
        %1361 = vmatpush1.msra.mxu0 0.0
        %1362 = vmatprep.subr.mxu0 0.0
        %1363 = vmatpush1.msra.mxu0 0.0
        %1364 = vmatprep.subr.mxu0 0.0
        %1365 = vmatpush1.msra.mxu0 0.0
        %1366 = vmatprep.subr.mxu0 0.0
        %1367 = vmatpush1.msra.mxu0 0.0
        %1368 = vmatprep.subr.mxu0 0.0
        %1369 = vmatpush1.msra.mxu0 0.0
        %1370 = vmatprep.subr.mxu0 0.0
        %1371 = vmatpush1.msra.mxu0 0.0
        %1372 = vmatprep.subr.mxu0 0.0
        %1373 = vmatpush1.msra.mxu0 0.0
        %1374 = vmatprep.subr.mxu0 0.0
        %1375 = vmatpush1.msra.mxu0 0.0
        %1376 = vmatprep.subr.mxu0 0.0
        %1377 = vmatpush1.msra.mxu0 0.0
        %1378 = vmatprep.subr.mxu0 0.0
        %1379 = vmatpush1.msra.mxu0 0.0
        %1380 = vmatprep.subr.mxu0 0.0
        %1381 = vmatpush1.msra.mxu0 0.0
        %1382 = vmatprep.subr.mxu0 0.0
        %1383 = vmatpush1.msra.mxu0 0.0
        %1384 = vmatprep.subr.mxu0 0.0
        %1385 = vmatpush1.msra.mxu0 0.0
        %1386 = vmatprep.subr.mxu0 0.0
        %1387 = vmatpush1.msra.mxu0 0.0
        %1388 = vmatprep.subr.mxu0 0.0
        %1389 = vmatpush1.msra.mxu0 0.0
        %1390 = vmatprep.subr.mxu0 0.0
        %1391 = vmatpush1.msra.mxu0 0.0
        %1392 = vmatprep.subr.mxu0 0.0
        %1393 = vmatpush1.msra.mxu0 0.0
        %1394 = vmatprep.subr.mxu0 0.0
        %1395 = vmatpush1.msra.mxu0 0.0
        %1396 = vmatprep.subr.mxu0 0.0
        %1397 = vmatpush1.msra.mxu0 0.0
        %1398 = vmatprep.subr.mxu0 0.0
        %1399 = vmatpush1.msra.mxu0 0.0
        %1400 = vmatprep.mubr.f32.mxu0 0.0
        %v1401 = vand.u32 %v1159, 4294901760
        %v1402 = vsub.f32 %v1159, %v1401
        %1403 = vmatmul.mubr.f32.gmra.mrb[0].mxu0 %v1402
        %v1404 = vpop.f32.mrb[0].mxu0
        %v1405 = vadd.f32 %v1325, %v1404
        %v1406 = vpop.f32.mrb[0].mxu0
        %1407 = vmatprep.mubr.f32.mxu0 0.0
        %v1408 = vand.u32 %v1161, 4294901760
        %v1409 = vsub.f32 %v1161, %v1408
        %1410 = vmatmul.mubr.f32.gmra.mrb[0].mxu0 %v1409
        %v1411 = vpop.f32.mrb[0].mxu0
        %v1412 = vadd.f32 %v1331, %v1411
        %v1413 = vpop.f32.mrb[0].mxu0
        %1414 = vdwg.mxu0
        %1415 = vmatprep.subr.mxu0 0.0
        %v1416 = vand.u32 %v1164, 4294901760
        %1417 = vmatpush1.msra.mxu0 %v1416
        %1418 = vmatprep.subr.mxu0 0.0
        %1419 = vmatpush1.msra.mxu0 0.0
        %1420 = vmatprep.subr.mxu0 0.0
        %1421 = vmatpush1.msra.mxu0 0.0
        %1422 = vmatprep.subr.mxu0 0.0
        %1423 = vmatpush1.msra.mxu0 0.0
        %1424 = vmatprep.subr.mxu0 0.0
        %1425 = vmatpush1.msra.mxu0 0.0
        %1426 = vmatprep.subr.mxu0 0.0
        %1427 = vmatpush1.msra.mxu0 0.0
        %1428 = vmatprep.subr.mxu0 0.0
        %1429 = vmatpush1.msra.mxu0 0.0
        %1430 = vmatprep.subr.mxu0 0.0
        %1431 = vmatpush1.msra.mxu0 0.0
        %1432 = vmatprep.subr.mxu0 0.0
        %1433 = vmatpush1.msra.mxu0 0.0
        %1434 = vmatprep.subr.mxu0 0.0
        %1435 = vmatpush1.msra.mxu0 0.0
        %1436 = vmatprep.subr.mxu0 0.0
        %1437 = vmatpush1.msra.mxu0 0.0
        %1438 = vmatprep.subr.mxu0 0.0
        %1439 = vmatpush1.msra.mxu0 0.0
        %1440 = vmatprep.subr.mxu0 0.0
        %1441 = vmatpush1.msra.mxu0 0.0
        %1442 = vmatprep.subr.mxu0 0.0
        %1443 = vmatpush1.msra.mxu0 0.0
        %1444 = vmatprep.subr.mxu0 0.0
        %1445 = vmatpush1.msra.mxu0 0.0
        %1446 = vmatprep.subr.mxu0 0.0
        %1447 = vmatpush1.msra.mxu0 0.0
        %1448 = vmatprep.subr.mxu0 0.0
        %1449 = vmatpush1.msra.mxu0 0.0
        %1450 = vmatprep.subr.mxu0 0.0
        %1451 = vmatpush1.msra.mxu0 0.0
        %1452 = vmatprep.subr.mxu0 0.0
        %1453 = vmatpush1.msra.mxu0 0.0
        %1454 = vmatprep.subr.mxu0 0.0
        %1455 = vmatpush1.msra.mxu0 0.0
        %1456 = vmatprep.subr.mxu0 0.0
        %1457 = vmatpush1.msra.mxu0 0.0
        %1458 = vmatprep.subr.mxu0 0.0
        %1459 = vmatpush1.msra.mxu0 0.0
        %1460 = vmatprep.subr.mxu0 0.0
        %1461 = vmatpush1.msra.mxu0 0.0
        %1462 = vmatprep.subr.mxu0 0.0
        %1463 = vmatpush1.msra.mxu0 0.0
        %1464 = vmatprep.subr.mxu0 0.0
        %1465 = vmatpush1.msra.mxu0 0.0
        %1466 = vmatprep.subr.mxu0 0.0
        %1467 = vmatpush1.msra.mxu0 0.0
        %1468 = vmatprep.subr.mxu0 0.0
        %1469 = vmatpush1.msra.mxu0 0.0
        %1470 = vmatprep.subr.mxu0 0.0
        %1471 = vmatpush1.msra.mxu0 0.0
        %1472 = vmatprep.subr.mxu0 0.0
        %1473 = vmatpush1.msra.mxu0 0.0
        %1474 = vmatprep.subr.mxu0 0.0
        %1475 = vmatpush1.msra.mxu0 0.0
        %1476 = vmatprep.subr.mxu0 0.0
        %1477 = vmatpush1.msra.mxu0 0.0
        %1478 = vmatprep.subr.mxu0 0.0
        %1479 = vmatpush1.msra.mxu0 0.0
        %1480 = vmatprep.mubr.f32.mxu0 0.0
        %v1481 = vand.u32 %v1159, 4294901760
        %v1482 = vsub.f32 %v1159, %v1481
        %v1483 = vand.u32 %v1482, 4294901760
        %1484 = vmatmul.mubr.f32.gmra.mrb[0].mxu0 %v1483
        %v1485 = vpop.f32.mrb[0].mxu0
        %v1486 = vadd.f32 %v1405, %v1485
        %v1487 = vpop.f32.mrb[0].mxu0
        %1488 = vmatprep.mubr.f32.mxu0 0.0
        %v1489 = vand.u32 %v1161, 4294901760
        %v1490 = vsub.f32 %v1161, %v1489
        %v1491 = vand.u32 %v1490, 4294901760
        %1492 = vmatmul.mubr.f32.gmra.mrb[0].mxu0 %v1491
        %v1493 = vpop.f32.mrb[0].mxu0
        %v1494 = vadd.f32 %v1412, %v1493
        %v1495 = vpop.f32.mrb[0].mxu0
        %1496 = vdwg.mxu0
        %1497 = vmatprep.subr.mxu0 0.0
        %v1498 = vand.u32 %v1164, 4294901760
        %v1499 = vsub.f32 %v1164, %v1498
        %v1500 = vand.u32 %v1499, 4294901760
        %1501 = vmatpush1.msra.mxu0 %v1500
        %1502 = vmatprep.subr.mxu0 0.0
        %1503 = vmatpush1.msra.mxu0 0.0
        %1504 = vmatprep.subr.mxu0 0.0
        %1505 = vmatpush1.msra.mxu0 0.0
        %1506 = vmatprep.subr.mxu0 0.0
        %1507 = vmatpush1.msra.mxu0 0.0
        %1508 = vmatprep.subr.mxu0 0.0
        %1509 = vmatpush1.msra.mxu0 0.0
        %1510 = vmatprep.subr.mxu0 0.0
        %1511 = vmatpush1.msra.mxu0 0.0
        %1512 = vmatprep.subr.mxu0 0.0
        %1513 = vmatpush1.msra.mxu0 0.0
        %1514 = vmatprep.subr.mxu0 0.0
        %1515 = vmatpush1.msra.mxu0 0.0
        %1516 = vmatprep.subr.mxu0 0.0
        %1517 = vmatpush1.msra.mxu0 0.0
        %1518 = vmatprep.subr.mxu0 0.0
        %1519 = vmatpush1.msra.mxu0 0.0
        %1520 = vmatprep.subr.mxu0 0.0
        %1521 = vmatpush1.msra.mxu0 0.0
        %1522 = vmatprep.subr.mxu0 0.0
        %1523 = vmatpush1.msra.mxu0 0.0
        %1524 = vmatprep.subr.mxu0 0.0
        %1525 = vmatpush1.msra.mxu0 0.0
        %1526 = vmatprep.subr.mxu0 0.0
        %1527 = vmatpush1.msra.mxu0 0.0
        %1528 = vmatprep.subr.mxu0 0.0
        %1529 = vmatpush1.msra.mxu0 0.0
        %1530 = vmatprep.subr.mxu0 0.0
        %1531 = vmatpush1.msra.mxu0 0.0
        %1532 = vmatprep.subr.mxu0 0.0
        %1533 = vmatpush1.msra.mxu0 0.0
        %1534 = vmatprep.subr.mxu0 0.0
        %1535 = vmatpush1.msra.mxu0 0.0
        %1536 = vmatprep.subr.mxu0 0.0
        %1537 = vmatpush1.msra.mxu0 0.0
        %1538 = vmatprep.subr.mxu0 0.0
        %1539 = vmatpush1.msra.mxu0 0.0
        %1540 = vmatprep.subr.mxu0 0.0
        %1541 = vmatpush1.msra.mxu0 0.0
        %1542 = vmatprep.subr.mxu0 0.0
        %1543 = vmatpush1.msra.mxu0 0.0
        %1544 = vmatprep.subr.mxu0 0.0
        %1545 = vmatpush1.msra.mxu0 0.0
        %1546 = vmatprep.subr.mxu0 0.0
        %1547 = vmatpush1.msra.mxu0 0.0
        %1548 = vmatprep.subr.mxu0 0.0
        %1549 = vmatpush1.msra.mxu0 0.0
        %1550 = vmatprep.subr.mxu0 0.0
        %1551 = vmatpush1.msra.mxu0 0.0
        %1552 = vmatprep.subr.mxu0 0.0
        %1553 = vmatpush1.msra.mxu0 0.0
        %1554 = vmatprep.subr.mxu0 0.0
        %1555 = vmatpush1.msra.mxu0 0.0
        %1556 = vmatprep.subr.mxu0 0.0
        %1557 = vmatpush1.msra.mxu0 0.0
        %1558 = vmatprep.subr.mxu0 0.0
        %1559 = vmatpush1.msra.mxu0 0.0
        %1560 = vmatprep.subr.mxu0 0.0
        %1561 = vmatpush1.msra.mxu0 0.0
        %1562 = vmatprep.subr.mxu0 0.0
        %1563 = vmatpush1.msra.mxu0 0.0
        %1564 = vmatprep.mubr.f32.mxu0 0.0
        %v1565 = vand.u32 %v1159, 4294901760
        %1566 = vmatmul.mubr.f32.gmra.mrb[0].mxu0 %v1565
        %v1567 = vpop.f32.mrb[0].mxu0
        %v1568 = vadd.f32 %v1486, %v1567
        %v1569 = vpop.f32.mrb[0].mxu0
        %1570 = vmatprep.mubr.f32.mxu0 0.0
        %v1571 = vand.u32 %v1161, 4294901760
        %1572 = vmatmul.mubr.f32.gmra.mrb[0].mxu0 %v1571
        %v1573 = vpop.f32.mrb[0].mxu0
        %v1574 = vadd.f32 %v1494, %v1573
        %v1575 = vpop.f32.mrb[0].mxu0
        %1576 = vdwg.mxu0
        %1577 = vmatprep.subr.mxu0 0.0
        %v1578 = vand.u32 %v1164, 4294901760
        %1579 = vmatpush1.msra.mxu0 %v1578
        %1580 = vmatprep.subr.mxu0 0.0
        %1581 = vmatpush1.msra.mxu0 0.0
        %1582 = vmatprep.subr.mxu0 0.0
        %1583 = vmatpush1.msra.mxu0 0.0
        %1584 = vmatprep.subr.mxu0 0.0
        %1585 = vmatpush1.msra.mxu0 0.0
        %1586 = vmatprep.subr.mxu0 0.0
        %1587 = vmatpush1.msra.mxu0 0.0
        %1588 = vmatprep.subr.mxu0 0.0
        %1589 = vmatpush1.msra.mxu0 0.0
        %1590 = vmatprep.subr.mxu0 0.0
        %1591 = vmatpush1.msra.mxu0 0.0
        %1592 = vmatprep.subr.mxu0 0.0
        %1593 = vmatpush1.msra.mxu0 0.0
        %1594 = vmatprep.subr.mxu0 0.0
        %1595 = vmatpush1.msra.mxu0 0.0
        %1596 = vmatprep.subr.mxu0 0.0
        %1597 = vmatpush1.msra.mxu0 0.0
        %1598 = vmatprep.subr.mxu0 0.0
        %1599 = vmatpush1.msra.mxu0 0.0
        %1600 = vmatprep.subr.mxu0 0.0
        %1601 = vmatpush1.msra.mxu0 0.0
        %1602 = vmatprep.subr.mxu0 0.0
        %1603 = vmatpush1.msra.mxu0 0.0
        %1604 = vmatprep.subr.mxu0 0.0
        %1605 = vmatpush1.msra.mxu0 0.0
        %1606 = vmatprep.subr.mxu0 0.0
        %1607 = vmatpush1.msra.mxu0 0.0
        %1608 = vmatprep.subr.mxu0 0.0
        %1609 = vmatpush1.msra.mxu0 0.0
        %1610 = vmatprep.subr.mxu0 0.0
        %1611 = vmatpush1.msra.mxu0 0.0
        %1612 = vmatprep.subr.mxu0 0.0
        %1613 = vmatpush1.msra.mxu0 0.0
        %1614 = vmatprep.subr.mxu0 0.0
        %1615 = vmatpush1.msra.mxu0 0.0
        %1616 = vmatprep.subr.mxu0 0.0
        %1617 = vmatpush1.msra.mxu0 0.0
        %1618 = vmatprep.subr.mxu0 0.0
        %1619 = vmatpush1.msra.mxu0 0.0
        %1620 = vmatprep.subr.mxu0 0.0
        %1621 = vmatpush1.msra.mxu0 0.0
        %1622 = vmatprep.subr.mxu0 0.0
        %1623 = vmatpush1.msra.mxu0 0.0
        %1624 = vmatprep.subr.mxu0 0.0
        %1625 = vmatpush1.msra.mxu0 0.0
        %1626 = vmatprep.subr.mxu0 0.0
        %1627 = vmatpush1.msra.mxu0 0.0
        %1628 = vmatprep.subr.mxu0 0.0
        %1629 = vmatpush1.msra.mxu0 0.0
        %1630 = vmatprep.subr.mxu0 0.0
        %1631 = vmatpush1.msra.mxu0 0.0
        %1632 = vmatprep.subr.mxu0 0.0
        %1633 = vmatpush1.msra.mxu0 0.0
        %1634 = vmatprep.subr.mxu0 0.0
        %1635 = vmatpush1.msra.mxu0 0.0
        %1636 = vmatprep.subr.mxu0 0.0
        %1637 = vmatpush1.msra.mxu0 0.0
        %1638 = vmatprep.subr.mxu0 0.0
        %1639 = vmatpush1.msra.mxu0 0.0
        %1640 = vmatprep.subr.mxu0 0.0
        %1641 = vmatpush1.msra.mxu0 0.0
        %1642 = vmatprep.mubr.f32.mxu0 0.0
        %v1643 = vand.u32 %v1159, 4294901760
        %1644 = vmatmul.mubr.f32.gmra.mrb[0].mxu0 %v1643
        %v1645 = vpop.f32.mrb[0].mxu0
        %v1646 = vadd.f32 %v1568, %v1645
        %v1647 = vpop.f32.mrb[0].mxu0
        %1648 = vmatprep.mubr.f32.mxu0 0.0
        %v1649 = vand.u32 %v1161, 4294901760
        %1650 = vmatmul.mubr.f32.gmra.mrb[0].mxu0 %v1649
        %v1651 = vpop.f32.mrb[0].mxu0
        %v1652 = vadd.f32 %v1574, %v1651
        %v1653 = vpop.f32.mrb[0].mxu0
        %1654 = vdwg.mxu0
        %1655 = vrot.lane.b32.xlu0 %v653, 120
        %v1656 = vpop.permute.xlu0 %1655
        %1657 = vrot.lane.b32.xlu0 %v654, 120
        %v1658 = vpop.permute.xlu0 %1657
        %v1659 = vsel %vm655, %v1656, 0
        %v1661 = vsel %vm655, %v1658, 0
        %v1664 = vsel %vm662, %v652, 0
        %1666 = vmatprep.subr.mxu0 0.0
        %v1667 = vand.u32 %v1664, 4294901760
        %1668 = vmatpush1.msra.mxu0 %v1667
        %1669 = vmatprep.subr.mxu0 0.0
        %1670 = vmatpush1.msra.mxu0 0.0
        %1671 = vmatprep.subr.mxu0 0.0
        %1672 = vmatpush1.msra.mxu0 0.0
        %1673 = vmatprep.subr.mxu0 0.0
        %1674 = vmatpush1.msra.mxu0 0.0
        %1675 = vmatprep.subr.mxu0 0.0
        %1676 = vmatpush1.msra.mxu0 0.0
        %1677 = vmatprep.subr.mxu0 0.0
        %1678 = vmatpush1.msra.mxu0 0.0
        %1679 = vmatprep.subr.mxu0 0.0
        %1680 = vmatpush1.msra.mxu0 0.0
        %1681 = vmatprep.subr.mxu0 0.0
        %1682 = vmatpush1.msra.mxu0 0.0
        %1683 = vmatprep.subr.mxu0 0.0
        %1684 = vmatpush1.msra.mxu0 0.0
        %1685 = vmatprep.subr.mxu0 0.0
        %1686 = vmatpush1.msra.mxu0 0.0
        %1687 = vmatprep.subr.mxu0 0.0
        %1688 = vmatpush1.msra.mxu0 0.0
        %1689 = vmatprep.subr.mxu0 0.0
        %1690 = vmatpush1.msra.mxu0 0.0
        %1691 = vmatprep.subr.mxu0 0.0
        %1692 = vmatpush1.msra.mxu0 0.0
        %1693 = vmatprep.subr.mxu0 0.0
        %1694 = vmatpush1.msra.mxu0 0.0
        %1695 = vmatprep.subr.mxu0 0.0
        %1696 = vmatpush1.msra.mxu0 0.0
        %1697 = vmatprep.subr.mxu0 0.0
        %1698 = vmatpush1.msra.mxu0 0.0
        %1699 = vmatprep.subr.mxu0 0.0
        %1700 = vmatpush1.msra.mxu0 0.0
        %1701 = vmatprep.subr.mxu0 0.0
        %1702 = vmatpush1.msra.mxu0 0.0
        %1703 = vmatprep.subr.mxu0 0.0
        %1704 = vmatpush1.msra.mxu0 0.0
        %1705 = vmatprep.subr.mxu0 0.0
        %1706 = vmatpush1.msra.mxu0 0.0
        %1707 = vmatprep.subr.mxu0 0.0
        %1708 = vmatpush1.msra.mxu0 0.0
        %1709 = vmatprep.subr.mxu0 0.0
        %1710 = vmatpush1.msra.mxu0 0.0
        %1711 = vmatprep.subr.mxu0 0.0
        %1712 = vmatpush1.msra.mxu0 0.0
        %1713 = vmatprep.subr.mxu0 0.0
        %1714 = vmatpush1.msra.mxu0 0.0
        %1715 = vmatprep.subr.mxu0 0.0
        %1716 = vmatpush1.msra.mxu0 0.0
        %1717 = vmatprep.subr.mxu0 0.0
        %1718 = vmatpush1.msra.mxu0 0.0
        %1719 = vmatprep.subr.mxu0 0.0
        %1720 = vmatpush1.msra.mxu0 0.0
        %1721 = vmatprep.subr.mxu0 0.0
        %1722 = vmatpush1.msra.mxu0 0.0
        %1723 = vmatprep.subr.mxu0 0.0
        %1724 = vmatpush1.msra.mxu0 0.0
        %1725 = vmatprep.subr.mxu0 0.0
        %1726 = vmatpush1.msra.mxu0 0.0
        %1727 = vmatprep.subr.mxu0 0.0
        %1728 = vmatpush1.msra.mxu0 0.0
        %1729 = vmatprep.subr.mxu0 0.0
        %1730 = vmatpush1.msra.mxu0 0.0
        %1731 = vmatprep.mubr.f32.mxu0 0.0
        %v1732 = vand.u32 %v1659, 4294901760
        %v1733 = vsub.f32 %v1659, %v1732
        %v1734 = vand.u32 %v1733, 4294901760
        %v1735 = vsub.f32 %v1733, %v1734
        %v1736 = vand.u32 %v1735, 4294901760
        %1737 = vmatmul.mubr.f32.gmra.mrb[0].mxu0 %v1736
        %v1738 = vpop.f32.mrb[0].mxu0
        %v1739 = vadd.f32 0.0, %v1738
        %v1740 = vpop.f32.mrb[0].mxu0
        %1741 = vmatprep.mubr.f32.mxu0 0.0
        %v1742 = vand.u32 %v1661, 4294901760
        %v1743 = vsub.f32 %v1661, %v1742
        %v1744 = vand.u32 %v1743, 4294901760
        %v1745 = vsub.f32 %v1743, %v1744
        %v1746 = vand.u32 %v1745, 4294901760
        %1747 = vmatmul.mubr.f32.gmra.mrb[0].mxu0 %v1746
        %v1748 = vpop.f32.mrb[0].mxu0
        %v1749 = vadd.f32 0.0, %v1748
        %v1750 = vpop.f32.mrb[0].mxu0
        %1751 = vdwg.mxu0
        %1752 = vmatprep.subr.mxu0 0.0
        %v1753 = vand.u32 %v1664, 4294901760
        %v1754 = vsub.f32 %v1664, %v1753
        %v1755 = vand.u32 %v1754, 4294901760
        %v1756 = vsub.f32 %v1754, %v1755
        %v1757 = vand.u32 %v1756, 4294901760
        %1758 = vmatpush1.msra.mxu0 %v1757
        %1759 = vmatprep.subr.mxu0 0.0
        %1760 = vmatpush1.msra.mxu0 0.0
        %1761 = vmatprep.subr.mxu0 0.0
        %1762 = vmatpush1.msra.mxu0 0.0
        %1763 = vmatprep.subr.mxu0 0.0
        %1764 = vmatpush1.msra.mxu0 0.0
        %1765 = vmatprep.subr.mxu0 0.0
        %1766 = vmatpush1.msra.mxu0 0.0
        %1767 = vmatprep.subr.mxu0 0.0
        %1768 = vmatpush1.msra.mxu0 0.0
        %1769 = vmatprep.subr.mxu0 0.0
        %1770 = vmatpush1.msra.mxu0 0.0
        %1771 = vmatprep.subr.mxu0 0.0
        %1772 = vmatpush1.msra.mxu0 0.0
        %1773 = vmatprep.subr.mxu0 0.0
        %1774 = vmatpush1.msra.mxu0 0.0
        %1775 = vmatprep.subr.mxu0 0.0
        %1776 = vmatpush1.msra.mxu0 0.0
        %1777 = vmatprep.subr.mxu0 0.0
        %1778 = vmatpush1.msra.mxu0 0.0
        %1779 = vmatprep.subr.mxu0 0.0
        %1780 = vmatpush1.msra.mxu0 0.0
        %1781 = vmatprep.subr.mxu0 0.0
        %1782 = vmatpush1.msra.mxu0 0.0
        %1783 = vmatprep.subr.mxu0 0.0
        %1784 = vmatpush1.msra.mxu0 0.0
        %1785 = vmatprep.subr.mxu0 0.0
        %1786 = vmatpush1.msra.mxu0 0.0
        %1787 = vmatprep.subr.mxu0 0.0
        %1788 = vmatpush1.msra.mxu0 0.0
        %1789 = vmatprep.subr.mxu0 0.0
        %1790 = vmatpush1.msra.mxu0 0.0
        %1791 = vmatprep.subr.mxu0 0.0
        %1792 = vmatpush1.msra.mxu0 0.0
        %1793 = vmatprep.subr.mxu0 0.0
        %1794 = vmatpush1.msra.mxu0 0.0
        %1795 = vmatprep.subr.mxu0 0.0
        %1796 = vmatpush1.msra.mxu0 0.0
        %1797 = vmatprep.subr.mxu0 0.0
        %1798 = vmatpush1.msra.mxu0 0.0
        %1799 = vmatprep.subr.mxu0 0.0
        %1800 = vmatpush1.msra.mxu0 0.0
        %1801 = vmatprep.subr.mxu0 0.0
        %1802 = vmatpush1.msra.mxu0 0.0
        %1803 = vmatprep.subr.mxu0 0.0
        %1804 = vmatpush1.msra.mxu0 0.0
        %1805 = vmatprep.subr.mxu0 0.0
        %1806 = vmatpush1.msra.mxu0 0.0
        %1807 = vmatprep.subr.mxu0 0.0
        %1808 = vmatpush1.msra.mxu0 0.0
        %1809 = vmatprep.subr.mxu0 0.0
        %1810 = vmatpush1.msra.mxu0 0.0
        %1811 = vmatprep.subr.mxu0 0.0
        %1812 = vmatpush1.msra.mxu0 0.0
        %1813 = vmatprep.subr.mxu0 0.0
        %1814 = vmatpush1.msra.mxu0 0.0
        %1815 = vmatprep.subr.mxu0 0.0
        %1816 = vmatpush1.msra.mxu0 0.0
        %1817 = vmatprep.subr.mxu0 0.0
        %1818 = vmatpush1.msra.mxu0 0.0
        %1819 = vmatprep.subr.mxu0 0.0
        %1820 = vmatpush1.msra.mxu0 0.0
        %1821 = vmatprep.mubr.f32.mxu0 0.0
        %v1822 = vand.u32 %v1659, 4294901760
        %1823 = vmatmul.mubr.f32.gmra.mrb[0].mxu0 %v1822
        %v1824 = vpop.f32.mrb[0].mxu0
        %v1825 = vadd.f32 %v1739, %v1824
        %v1826 = vpop.f32.mrb[0].mxu0
        %1827 = vmatprep.mubr.f32.mxu0 0.0
        %v1828 = vand.u32 %v1661, 4294901760
        %1829 = vmatmul.mubr.f32.gmra.mrb[0].mxu0 %v1828
        %v1830 = vpop.f32.mrb[0].mxu0
        %v1831 = vadd.f32 %v1749, %v1830
        %v1832 = vpop.f32.mrb[0].mxu0
        %1833 = vdwg.mxu0
        %1834 = vmatprep.subr.mxu0 0.0
        %v1835 = vand.u32 %v1664, 4294901760
        %v1836 = vsub.f32 %v1664, %v1835
        %1837 = vmatpush1.msra.mxu0 %v1836
        %1838 = vmatprep.subr.mxu0 0.0
        %1839 = vmatpush1.msra.mxu0 0.0
        %1840 = vmatprep.subr.mxu0 0.0
        %1841 = vmatpush1.msra.mxu0 0.0
        %1842 = vmatprep.subr.mxu0 0.0
        %1843 = vmatpush1.msra.mxu0 0.0
        %1844 = vmatprep.subr.mxu0 0.0
        %1845 = vmatpush1.msra.mxu0 0.0
        %1846 = vmatprep.subr.mxu0 0.0
        %1847 = vmatpush1.msra.mxu0 0.0
        %1848 = vmatprep.subr.mxu0 0.0
        %1849 = vmatpush1.msra.mxu0 0.0
        %1850 = vmatprep.subr.mxu0 0.0
        %1851 = vmatpush1.msra.mxu0 0.0
        %1852 = vmatprep.subr.mxu0 0.0
        %1853 = vmatpush1.msra.mxu0 0.0
        %1854 = vmatprep.subr.mxu0 0.0
        %1855 = vmatpush1.msra.mxu0 0.0
        %1856 = vmatprep.subr.mxu0 0.0
        %1857 = vmatpush1.msra.mxu0 0.0
        %1858 = vmatprep.subr.mxu0 0.0
        %1859 = vmatpush1.msra.mxu0 0.0
        %1860 = vmatprep.subr.mxu0 0.0
        %1861 = vmatpush1.msra.mxu0 0.0
        %1862 = vmatprep.subr.mxu0 0.0
        %1863 = vmatpush1.msra.mxu0 0.0
        %1864 = vmatprep.subr.mxu0 0.0
        %1865 = vmatpush1.msra.mxu0 0.0
        %1866 = vmatprep.subr.mxu0 0.0
        %1867 = vmatpush1.msra.mxu0 0.0
        %1868 = vmatprep.subr.mxu0 0.0
        %1869 = vmatpush1.msra.mxu0 0.0
        %1870 = vmatprep.subr.mxu0 0.0
        %1871 = vmatpush1.msra.mxu0 0.0
        %1872 = vmatprep.subr.mxu0 0.0
        %1873 = vmatpush1.msra.mxu0 0.0
        %1874 = vmatprep.subr.mxu0 0.0
        %1875 = vmatpush1.msra.mxu0 0.0
        %1876 = vmatprep.subr.mxu0 0.0
        %1877 = vmatpush1.msra.mxu0 0.0
        %1878 = vmatprep.subr.mxu0 0.0
        %1879 = vmatpush1.msra.mxu0 0.0
        %1880 = vmatprep.subr.mxu0 0.0
        %1881 = vmatpush1.msra.mxu0 0.0
        %1882 = vmatprep.subr.mxu0 0.0
        %1883 = vmatpush1.msra.mxu0 0.0
        %1884 = vmatprep.subr.mxu0 0.0
        %1885 = vmatpush1.msra.mxu0 0.0
        %1886 = vmatprep.subr.mxu0 0.0
        %1887 = vmatpush1.msra.mxu0 0.0
        %1888 = vmatprep.subr.mxu0 0.0
        %1889 = vmatpush1.msra.mxu0 0.0
        %1890 = vmatprep.subr.mxu0 0.0
        %1891 = vmatpush1.msra.mxu0 0.0
        %1892 = vmatprep.subr.mxu0 0.0
        %1893 = vmatpush1.msra.mxu0 0.0
        %1894 = vmatprep.subr.mxu0 0.0
        %1895 = vmatpush1.msra.mxu0 0.0
        %1896 = vmatprep.subr.mxu0 0.0
        %1897 = vmatpush1.msra.mxu0 0.0
        %1898 = vmatprep.subr.mxu0 0.0
        %1899 = vmatpush1.msra.mxu0 0.0
        %1900 = vmatprep.mubr.f32.mxu0 0.0
        %v1901 = vand.u32 %v1659, 4294901760
        %v1902 = vsub.f32 %v1659, %v1901
        %1903 = vmatmul.mubr.f32.gmra.mrb[0].mxu0 %v1902
        %v1904 = vpop.f32.mrb[0].mxu0
        %v1905 = vadd.f32 %v1825, %v1904
        %v1906 = vpop.f32.mrb[0].mxu0
        %1907 = vmatprep.mubr.f32.mxu0 0.0
        %v1908 = vand.u32 %v1661, 4294901760
        %v1909 = vsub.f32 %v1661, %v1908
        %1910 = vmatmul.mubr.f32.gmra.mrb[0].mxu0 %v1909
        %v1911 = vpop.f32.mrb[0].mxu0
        %v1912 = vadd.f32 %v1831, %v1911
        %v1913 = vpop.f32.mrb[0].mxu0
        %1914 = vdwg.mxu0
        %1915 = vmatprep.subr.mxu0 0.0
        %v1916 = vand.u32 %v1664, 4294901760
        %1917 = vmatpush1.msra.mxu0 %v1916
        %1918 = vmatprep.subr.mxu0 0.0
        %1919 = vmatpush1.msra.mxu0 0.0
        %1920 = vmatprep.subr.mxu0 0.0
        %1921 = vmatpush1.msra.mxu0 0.0
        %1922 = vmatprep.subr.mxu0 0.0
        %1923 = vmatpush1.msra.mxu0 0.0
        %1924 = vmatprep.subr.mxu0 0.0
        %1925 = vmatpush1.msra.mxu0 0.0
        %1926 = vmatprep.subr.mxu0 0.0
        %1927 = vmatpush1.msra.mxu0 0.0
        %1928 = vmatprep.subr.mxu0 0.0
        %1929 = vmatpush1.msra.mxu0 0.0
        %1930 = vmatprep.subr.mxu0 0.0
        %1931 = vmatpush1.msra.mxu0 0.0
        %1932 = vmatprep.subr.mxu0 0.0
        %1933 = vmatpush1.msra.mxu0 0.0
        %1934 = vmatprep.subr.mxu0 0.0
        %1935 = vmatpush1.msra.mxu0 0.0
        %1936 = vmatprep.subr.mxu0 0.0
        %1937 = vmatpush1.msra.mxu0 0.0
        %1938 = vmatprep.subr.mxu0 0.0
        %1939 = vmatpush1.msra.mxu0 0.0
        %1940 = vmatprep.subr.mxu0 0.0
        %1941 = vmatpush1.msra.mxu0 0.0
        %1942 = vmatprep.subr.mxu0 0.0
        %1943 = vmatpush1.msra.mxu0 0.0
        %1944 = vmatprep.subr.mxu0 0.0
        %1945 = vmatpush1.msra.mxu0 0.0
        %1946 = vmatprep.subr.mxu0 0.0
        %1947 = vmatpush1.msra.mxu0 0.0
        %1948 = vmatprep.subr.mxu0 0.0
        %1949 = vmatpush1.msra.mxu0 0.0
        %1950 = vmatprep.subr.mxu0 0.0
        %1951 = vmatpush1.msra.mxu0 0.0
        %1952 = vmatprep.subr.mxu0 0.0
        %1953 = vmatpush1.msra.mxu0 0.0
        %1954 = vmatprep.subr.mxu0 0.0
        %1955 = vmatpush1.msra.mxu0 0.0
        %1956 = vmatprep.subr.mxu0 0.0
        %1957 = vmatpush1.msra.mxu0 0.0
        %1958 = vmatprep.subr.mxu0 0.0
        %1959 = vmatpush1.msra.mxu0 0.0
        %1960 = vmatprep.subr.mxu0 0.0
        %1961 = vmatpush1.msra.mxu0 0.0
        %1962 = vmatprep.subr.mxu0 0.0
        %1963 = vmatpush1.msra.mxu0 0.0
        %1964 = vmatprep.subr.mxu0 0.0
        %1965 = vmatpush1.msra.mxu0 0.0
        %1966 = vmatprep.subr.mxu0 0.0
        %1967 = vmatpush1.msra.mxu0 0.0
        %1968 = vmatprep.subr.mxu0 0.0
        %1969 = vmatpush1.msra.mxu0 0.0
        %1970 = vmatprep.subr.mxu0 0.0
        %1971 = vmatpush1.msra.mxu0 0.0
        %1972 = vmatprep.subr.mxu0 0.0
        %1973 = vmatpush1.msra.mxu0 0.0
        %1974 = vmatprep.subr.mxu0 0.0
        %1975 = vmatpush1.msra.mxu0 0.0
        %1976 = vmatprep.subr.mxu0 0.0
        %1977 = vmatpush1.msra.mxu0 0.0
        %1978 = vmatprep.subr.mxu0 0.0
        %1979 = vmatpush1.msra.mxu0 0.0
        %1980 = vmatprep.mubr.f32.mxu0 0.0
        %v1981 = vand.u32 %v1659, 4294901760
        %v1982 = vsub.f32 %v1659, %v1981
        %v1983 = vand.u32 %v1982, 4294901760
        %1984 = vmatmul.mubr.f32.gmra.mrb[0].mxu0 %v1983
        %v1985 = vpop.f32.mrb[0].mxu0
        %v1986 = vadd.f32 %v1905, %v1985
        %v1987 = vpop.f32.mrb[0].mxu0
        %1988 = vmatprep.mubr.f32.mxu0 0.0
        %v1989 = vand.u32 %v1661, 4294901760
        %v1990 = vsub.f32 %v1661, %v1989
        %v1991 = vand.u32 %v1990, 4294901760
        %1992 = vmatmul.mubr.f32.gmra.mrb[0].mxu0 %v1991
        %v1993 = vpop.f32.mrb[0].mxu0
        %v1994 = vadd.f32 %v1912, %v1993
        %v1995 = vpop.f32.mrb[0].mxu0
        %1996 = vdwg.mxu0
        %1997 = vmatprep.subr.mxu0 0.0
        %v1998 = vand.u32 %v1664, 4294901760
        %v1999 = vsub.f32 %v1664, %v1998
        %v2000 = vand.u32 %v1999, 4294901760
        %2001 = vmatpush1.msra.mxu0 %v2000
        %2002 = vmatprep.subr.mxu0 0.0
        %2003 = vmatpush1.msra.mxu0 0.0
        %2004 = vmatprep.subr.mxu0 0.0
        %2005 = vmatpush1.msra.mxu0 0.0
        %2006 = vmatprep.subr.mxu0 0.0
        %2007 = vmatpush1.msra.mxu0 0.0
        %2008 = vmatprep.subr.mxu0 0.0
        %2009 = vmatpush1.msra.mxu0 0.0
        %2010 = vmatprep.subr.mxu0 0.0
        %2011 = vmatpush1.msra.mxu0 0.0
        %2012 = vmatprep.subr.mxu0 0.0
        %2013 = vmatpush1.msra.mxu0 0.0
        %2014 = vmatprep.subr.mxu0 0.0
        %2015 = vmatpush1.msra.mxu0 0.0
        %2016 = vmatprep.subr.mxu0 0.0
        %2017 = vmatpush1.msra.mxu0 0.0
        %2018 = vmatprep.subr.mxu0 0.0
        %2019 = vmatpush1.msra.mxu0 0.0
        %2020 = vmatprep.subr.mxu0 0.0
        %2021 = vmatpush1.msra.mxu0 0.0
        %2022 = vmatprep.subr.mxu0 0.0
        %2023 = vmatpush1.msra.mxu0 0.0
        %2024 = vmatprep.subr.mxu0 0.0
        %2025 = vmatpush1.msra.mxu0 0.0
        %2026 = vmatprep.subr.mxu0 0.0
        %2027 = vmatpush1.msra.mxu0 0.0
        %2028 = vmatprep.subr.mxu0 0.0
        %2029 = vmatpush1.msra.mxu0 0.0
        %2030 = vmatprep.subr.mxu0 0.0
        %2031 = vmatpush1.msra.mxu0 0.0
        %2032 = vmatprep.subr.mxu0 0.0
        %2033 = vmatpush1.msra.mxu0 0.0
        %2034 = vmatprep.subr.mxu0 0.0
        %2035 = vmatpush1.msra.mxu0 0.0
        %2036 = vmatprep.subr.mxu0 0.0
        %2037 = vmatpush1.msra.mxu0 0.0
        %2038 = vmatprep.subr.mxu0 0.0
        %2039 = vmatpush1.msra.mxu0 0.0
        %2040 = vmatprep.subr.mxu0 0.0
        %2041 = vmatpush1.msra.mxu0 0.0
        %2042 = vmatprep.subr.mxu0 0.0
        %2043 = vmatpush1.msra.mxu0 0.0
        %2044 = vmatprep.subr.mxu0 0.0
        %2045 = vmatpush1.msra.mxu0 0.0
        %2046 = vmatprep.subr.mxu0 0.0
        %2047 = vmatpush1.msra.mxu0 0.0
        %2048 = vmatprep.subr.mxu0 0.0
        %2049 = vmatpush1.msra.mxu0 0.0
        %2050 = vmatprep.subr.mxu0 0.0
        %2051 = vmatpush1.msra.mxu0 0.0
        %2052 = vmatprep.subr.mxu0 0.0
        %2053 = vmatpush1.msra.mxu0 0.0
        %2054 = vmatprep.subr.mxu0 0.0
        %2055 = vmatpush1.msra.mxu0 0.0
        %2056 = vmatprep.subr.mxu0 0.0
        %2057 = vmatpush1.msra.mxu0 0.0
        %2058 = vmatprep.subr.mxu0 0.0
        %2059 = vmatpush1.msra.mxu0 0.0
        %2060 = vmatprep.subr.mxu0 0.0
        %2061 = vmatpush1.msra.mxu0 0.0
        %2062 = vmatprep.subr.mxu0 0.0
        %2063 = vmatpush1.msra.mxu0 0.0
        %2064 = vmatprep.mubr.f32.mxu0 0.0
        %v2065 = vand.u32 %v1659, 4294901760
        %2066 = vmatmul.mubr.f32.gmra.mrb[0].mxu0 %v2065
        %v2067 = vpop.f32.mrb[0].mxu0
        %v2068 = vadd.f32 %v1986, %v2067
        %v2069 = vpop.f32.mrb[0].mxu0
        %2070 = vmatprep.mubr.f32.mxu0 0.0
        %v2071 = vand.u32 %v1661, 4294901760
        %2072 = vmatmul.mubr.f32.gmra.mrb[0].mxu0 %v2071
        %v2073 = vpop.f32.mrb[0].mxu0
        %v2074 = vadd.f32 %v1994, %v2073
        %v2075 = vpop.f32.mrb[0].mxu0
        %2076 = vdwg.mxu0
        %2077 = vmatprep.subr.mxu0 0.0
        %v2078 = vand.u32 %v1664, 4294901760
        %2079 = vmatpush1.msra.mxu0 %v2078
        %2080 = vmatprep.subr.mxu0 0.0
        %2081 = vmatpush1.msra.mxu0 0.0
        %2082 = vmatprep.subr.mxu0 0.0
        %2083 = vmatpush1.msra.mxu0 0.0
        %2084 = vmatprep.subr.mxu0 0.0
        %2085 = vmatpush1.msra.mxu0 0.0
        %2086 = vmatprep.subr.mxu0 0.0
        %2087 = vmatpush1.msra.mxu0 0.0
        %2088 = vmatprep.subr.mxu0 0.0
        %2089 = vmatpush1.msra.mxu0 0.0
        %2090 = vmatprep.subr.mxu0 0.0
        %2091 = vmatpush1.msra.mxu0 0.0
        %2092 = vmatprep.subr.mxu0 0.0
        %2093 = vmatpush1.msra.mxu0 0.0
        %2094 = vmatprep.subr.mxu0 0.0
        %2095 = vmatpush1.msra.mxu0 0.0
        %2096 = vmatprep.subr.mxu0 0.0
        %2097 = vmatpush1.msra.mxu0 0.0
        %2098 = vmatprep.subr.mxu0 0.0
        %2099 = vmatpush1.msra.mxu0 0.0
        %2100 = vmatprep.subr.mxu0 0.0
        %2101 = vmatpush1.msra.mxu0 0.0
        %2102 = vmatprep.subr.mxu0 0.0
        %2103 = vmatpush1.msra.mxu0 0.0
        %2104 = vmatprep.subr.mxu0 0.0
        %2105 = vmatpush1.msra.mxu0 0.0
        %2106 = vmatprep.subr.mxu0 0.0
        %2107 = vmatpush1.msra.mxu0 0.0
        %2108 = vmatprep.subr.mxu0 0.0
        %2109 = vmatpush1.msra.mxu0 0.0
        %2110 = vmatprep.subr.mxu0 0.0
        %2111 = vmatpush1.msra.mxu0 0.0
        %2112 = vmatprep.subr.mxu0 0.0
        %2113 = vmatpush1.msra.mxu0 0.0
        %2114 = vmatprep.subr.mxu0 0.0
        %2115 = vmatpush1.msra.mxu0 0.0
        %2116 = vmatprep.subr.mxu0 0.0
        %2117 = vmatpush1.msra.mxu0 0.0
        %2118 = vmatprep.subr.mxu0 0.0
        %2119 = vmatpush1.msra.mxu0 0.0
        %2120 = vmatprep.subr.mxu0 0.0
        %2121 = vmatpush1.msra.mxu0 0.0
        %2122 = vmatprep.subr.mxu0 0.0
        %2123 = vmatpush1.msra.mxu0 0.0
        %2124 = vmatprep.subr.mxu0 0.0
        %2125 = vmatpush1.msra.mxu0 0.0
        %2126 = vmatprep.subr.mxu0 0.0
        %2127 = vmatpush1.msra.mxu0 0.0
        %2128 = vmatprep.subr.mxu0 0.0
        %2129 = vmatpush1.msra.mxu0 0.0
        %2130 = vmatprep.subr.mxu0 0.0
        %2131 = vmatpush1.msra.mxu0 0.0
        %2132 = vmatprep.subr.mxu0 0.0
        %2133 = vmatpush1.msra.mxu0 0.0
        %2134 = vmatprep.subr.mxu0 0.0
        %2135 = vmatpush1.msra.mxu0 0.0
        %2136 = vmatprep.subr.mxu0 0.0
        %2137 = vmatpush1.msra.mxu0 0.0
        %2138 = vmatprep.subr.mxu0 0.0
        %2139 = vmatpush1.msra.mxu0 0.0
        %2140 = vmatprep.subr.mxu0 0.0
        %2141 = vmatpush1.msra.mxu0 0.0
        %2142 = vmatprep.mubr.f32.mxu0 0.0
        %v2143 = vand.u32 %v1659, 4294901760
        %2144 = vmatmul.mubr.f32.gmra.mrb[0].mxu0 %v2143
        %v2145 = vpop.f32.mrb[0].mxu0
        %v2146 = vadd.f32 %v2068, %v2145
        %v2147 = vpop.f32.mrb[0].mxu0
        %2148 = vmatprep.mubr.f32.mxu0 0.0
        %v2149 = vand.u32 %v1661, 4294901760
        %2150 = vmatmul.mubr.f32.gmra.mrb[0].mxu0 %v2149
        %v2151 = vpop.f32.mrb[0].mxu0
        %v2152 = vadd.f32 %v2074, %v2151
        %v2153 = vpop.f32.mrb[0].mxu0
        %2154 = vdwg.mxu0
        %v2155 = vadd.f32 %v1646, %v2146
        %v2156 = vadd.f32 %v1652, %v2152
        %2157 = vset.pattern.permute.xlu0 16
        %2158 = vperm.xlu0 %2157, %v653
        %v2159 = vpop.permute.xlu0 %2158
        %2161 = vset.pattern.permute.xlu0 16
        %2162 = vperm.xlu0 %2161, %v654
        %v2163 = vpop.permute.xlu0 %2162
        %v2165 = vadd.f32 %v2155, %v2159
        %v2166 = vadd.f32 %v2156, %v2163
        %2167 = vrot.lane.b32.xlu0 %v653, 116
        %v2168 = vpop.permute.xlu0 %2167
        %2169 = vrot.lane.b32.xlu0 %v654, 116
        %v2170 = vpop.permute.xlu0 %2169
        %v2171 = vrot.slane %v640, 4
        %v2172 = vsel %vm655, %v2168, 0
        %v2174 = vsel %vm655, %v2170, 0
        %v2176 = vsel %vm662, %v2171, 0
        %2178 = vmatprep.subr.mxu0 0.0
        %v2179 = vand.u32 %v2176, 4294901760
        %2180 = vmatpush1.msra.mxu0 %v2179
        %2181 = vmatprep.subr.mxu0 0.0
        %2182 = vmatpush1.msra.mxu0 0.0
        %2183 = vmatprep.subr.mxu0 0.0
        %2184 = vmatpush1.msra.mxu0 0.0
        %2185 = vmatprep.subr.mxu0 0.0
        %2186 = vmatpush1.msra.mxu0 0.0
        %2187 = vmatprep.subr.mxu0 0.0
        %2188 = vmatpush1.msra.mxu0 0.0
        %2189 = vmatprep.subr.mxu0 0.0
        %2190 = vmatpush1.msra.mxu0 0.0
        %2191 = vmatprep.subr.mxu0 0.0
        %2192 = vmatpush1.msra.mxu0 0.0
        %2193 = vmatprep.subr.mxu0 0.0
        %2194 = vmatpush1.msra.mxu0 0.0
        %2195 = vmatprep.subr.mxu0 0.0
        %2196 = vmatpush1.msra.mxu0 0.0
        %2197 = vmatprep.subr.mxu0 0.0
        %2198 = vmatpush1.msra.mxu0 0.0
        %2199 = vmatprep.subr.mxu0 0.0
        %2200 = vmatpush1.msra.mxu0 0.0
        %2201 = vmatprep.subr.mxu0 0.0
        %2202 = vmatpush1.msra.mxu0 0.0
        %2203 = vmatprep.subr.mxu0 0.0
        %2204 = vmatpush1.msra.mxu0 0.0
        %2205 = vmatprep.subr.mxu0 0.0
        %2206 = vmatpush1.msra.mxu0 0.0
        %2207 = vmatprep.subr.mxu0 0.0
        %2208 = vmatpush1.msra.mxu0 0.0
        %2209 = vmatprep.subr.mxu0 0.0
        %2210 = vmatpush1.msra.mxu0 0.0
        %2211 = vmatprep.subr.mxu0 0.0
        %2212 = vmatpush1.msra.mxu0 0.0
        %2213 = vmatprep.subr.mxu0 0.0
        %2214 = vmatpush1.msra.mxu0 0.0
        %2215 = vmatprep.subr.mxu0 0.0
        %2216 = vmatpush1.msra.mxu0 0.0
        %2217 = vmatprep.subr.mxu0 0.0
        %2218 = vmatpush1.msra.mxu0 0.0
        %2219 = vmatprep.subr.mxu0 0.0
        %2220 = vmatpush1.msra.mxu0 0.0
        %2221 = vmatprep.subr.mxu0 0.0
        %2222 = vmatpush1.msra.mxu0 0.0
        %2223 = vmatprep.subr.mxu0 0.0
        %2224 = vmatpush1.msra.mxu0 0.0
        %2225 = vmatprep.subr.mxu0 0.0
        %2226 = vmatpush1.msra.mxu0 0.0
        %2227 = vmatprep.subr.mxu0 0.0
        %2228 = vmatpush1.msra.mxu0 0.0
        %2229 = vmatprep.subr.mxu0 0.0
        %2230 = vmatpush1.msra.mxu0 0.0
        %2231 = vmatprep.subr.mxu0 0.0
        %2232 = vmatpush1.msra.mxu0 0.0
        %2233 = vmatprep.subr.mxu0 0.0
        %2234 = vmatpush1.msra.mxu0 0.0
        %2235 = vmatprep.subr.mxu0 0.0
        %2236 = vmatpush1.msra.mxu0 0.0
        %2237 = vmatprep.subr.mxu0 0.0
        %2238 = vmatpush1.msra.mxu0 0.0
        %2239 = vmatprep.subr.mxu0 0.0
        %2240 = vmatpush1.msra.mxu0 0.0
        %2241 = vmatprep.subr.mxu0 0.0
        %2242 = vmatpush1.msra.mxu0 0.0
        %2243 = vmatprep.mubr.f32.mxu0 0.0
        %v2244 = vand.u32 %v2172, 4294901760
        %v2245 = vsub.f32 %v2172, %v2244
        %v2246 = vand.u32 %v2245, 4294901760
        %v2247 = vsub.f32 %v2245, %v2246
        %v2248 = vand.u32 %v2247, 4294901760
        %2249 = vmatmul.mubr.f32.gmra.mrb[0].mxu0 %v2248
        %v2250 = vpop.f32.mrb[0].mxu0
        %v2251 = vadd.f32 0.0, %v2250
        %v2252 = vpop.f32.mrb[0].mxu0
        %2253 = vmatprep.mubr.f32.mxu0 0.0
        %v2254 = vand.u32 %v2174, 4294901760
        %v2255 = vsub.f32 %v2174, %v2254
        %v2256 = vand.u32 %v2255, 4294901760
        %v2257 = vsub.f32 %v2255, %v2256
        %v2258 = vand.u32 %v2257, 4294901760
        %2259 = vmatmul.mubr.f32.gmra.mrb[0].mxu0 %v2258
        %v2260 = vpop.f32.mrb[0].mxu0
        %v2261 = vadd.f32 0.0, %v2260
        %v2262 = vpop.f32.mrb[0].mxu0
        %2263 = vdwg.mxu0
        %2264 = vmatprep.subr.mxu0 0.0
        %v2265 = vand.u32 %v2176, 4294901760
        %v2266 = vsub.f32 %v2176, %v2265
        %v2267 = vand.u32 %v2266, 4294901760
        %v2268 = vsub.f32 %v2266, %v2267
        %v2269 = vand.u32 %v2268, 4294901760
        %2270 = vmatpush1.msra.mxu0 %v2269
        %2271 = vmatprep.subr.mxu0 0.0
        %2272 = vmatpush1.msra.mxu0 0.0
        %2273 = vmatprep.subr.mxu0 0.0
        %2274 = vmatpush1.msra.mxu0 0.0
        %2275 = vmatprep.subr.mxu0 0.0
        %2276 = vmatpush1.msra.mxu0 0.0
        %2277 = vmatprep.subr.mxu0 0.0
        %2278 = vmatpush1.msra.mxu0 0.0
        %2279 = vmatprep.subr.mxu0 0.0
        %2280 = vmatpush1.msra.mxu0 0.0
        %2281 = vmatprep.subr.mxu0 0.0
        %2282 = vmatpush1.msra.mxu0 0.0
        %2283 = vmatprep.subr.mxu0 0.0
        %2284 = vmatpush1.msra.mxu0 0.0
        %2285 = vmatprep.subr.mxu0 0.0
        %2286 = vmatpush1.msra.mxu0 0.0
        %2287 = vmatprep.subr.mxu0 0.0
        %2288 = vmatpush1.msra.mxu0 0.0
        %2289 = vmatprep.subr.mxu0 0.0
        %2290 = vmatpush1.msra.mxu0 0.0
        %2291 = vmatprep.subr.mxu0 0.0
        %2292 = vmatpush1.msra.mxu0 0.0
        %2293 = vmatprep.subr.mxu0 0.0
        %2294 = vmatpush1.msra.mxu0 0.0
        %2295 = vmatprep.subr.mxu0 0.0
        %2296 = vmatpush1.msra.mxu0 0.0
        %2297 = vmatprep.subr.mxu0 0.0
        %2298 = vmatpush1.msra.mxu0 0.0
        %2299 = vmatprep.subr.mxu0 0.0
        %2300 = vmatpush1.msra.mxu0 0.0
        %2301 = vmatprep.subr.mxu0 0.0
        %2302 = vmatpush1.msra.mxu0 0.0
        %2303 = vmatprep.subr.mxu0 0.0
        %2304 = vmatpush1.msra.mxu0 0.0
        %2305 = vmatprep.subr.mxu0 0.0
        %2306 = vmatpush1.msra.mxu0 0.0
        %2307 = vmatprep.subr.mxu0 0.0
        %2308 = vmatpush1.msra.mxu0 0.0
        %2309 = vmatprep.subr.mxu0 0.0
        %2310 = vmatpush1.msra.mxu0 0.0
        %2311 = vmatprep.subr.mxu0 0.0
        %2312 = vmatpush1.msra.mxu0 0.0
        %2313 = vmatprep.subr.mxu0 0.0
        %2314 = vmatpush1.msra.mxu0 0.0
        %2315 = vmatprep.subr.mxu0 0.0
        %2316 = vmatpush1.msra.mxu0 0.0
        %2317 = vmatprep.subr.mxu0 0.0
        %2318 = vmatpush1.msra.mxu0 0.0
        %2319 = vmatprep.subr.mxu0 0.0
        %2320 = vmatpush1.msra.mxu0 0.0
        %2321 = vmatprep.subr.mxu0 0.0
        %2322 = vmatpush1.msra.mxu0 0.0
        %2323 = vmatprep.subr.mxu0 0.0
        %2324 = vmatpush1.msra.mxu0 0.0
        %2325 = vmatprep.subr.mxu0 0.0
        %2326 = vmatpush1.msra.mxu0 0.0
        %2327 = vmatprep.subr.mxu0 0.0
        %2328 = vmatpush1.msra.mxu0 0.0
        %2329 = vmatprep.subr.mxu0 0.0
        %2330 = vmatpush1.msra.mxu0 0.0
        %2331 = vmatprep.subr.mxu0 0.0
        %2332 = vmatpush1.msra.mxu0 0.0
        %2333 = vmatprep.mubr.f32.mxu0 0.0
        %v2334 = vand.u32 %v2172, 4294901760
        %2335 = vmatmul.mubr.f32.gmra.mrb[0].mxu0 %v2334
        %v2336 = vpop.f32.mrb[0].mxu0
        %v2337 = vadd.f32 %v2251, %v2336
        %v2338 = vpop.f32.mrb[0].mxu0
        %2339 = vmatprep.mubr.f32.mxu0 0.0
        %v2340 = vand.u32 %v2174, 4294901760
        %2341 = vmatmul.mubr.f32.gmra.mrb[0].mxu0 %v2340
        %v2342 = vpop.f32.mrb[0].mxu0
        %v2343 = vadd.f32 %v2261, %v2342
        %v2344 = vpop.f32.mrb[0].mxu0
        %2345 = vdwg.mxu0
        %2346 = vmatprep.subr.mxu0 0.0
        %v2347 = vand.u32 %v2176, 4294901760
        %v2348 = vsub.f32 %v2176, %v2347
        %2349 = vmatpush1.msra.mxu0 %v2348
        %2350 = vmatprep.subr.mxu0 0.0
        %2351 = vmatpush1.msra.mxu0 0.0
        %2352 = vmatprep.subr.mxu0 0.0
        %2353 = vmatpush1.msra.mxu0 0.0
        %2354 = vmatprep.subr.mxu0 0.0
        %2355 = vmatpush1.msra.mxu0 0.0
        %2356 = vmatprep.subr.mxu0 0.0
        %2357 = vmatpush1.msra.mxu0 0.0
        %2358 = vmatprep.subr.mxu0 0.0
        %2359 = vmatpush1.msra.mxu0 0.0
        %2360 = vmatprep.subr.mxu0 0.0
        %2361 = vmatpush1.msra.mxu0 0.0
        %2362 = vmatprep.subr.mxu0 0.0
        %2363 = vmatpush1.msra.mxu0 0.0
        %2364 = vmatprep.subr.mxu0 0.0
        %2365 = vmatpush1.msra.mxu0 0.0
        %2366 = vmatprep.subr.mxu0 0.0
        %2367 = vmatpush1.msra.mxu0 0.0
        %2368 = vmatprep.subr.mxu0 0.0
        %2369 = vmatpush1.msra.mxu0 0.0
        %2370 = vmatprep.subr.mxu0 0.0
        %2371 = vmatpush1.msra.mxu0 0.0
        %2372 = vmatprep.subr.mxu0 0.0
        %2373 = vmatpush1.msra.mxu0 0.0
        %2374 = vmatprep.subr.mxu0 0.0
        %2375 = vmatpush1.msra.mxu0 0.0
        %2376 = vmatprep.subr.mxu0 0.0
        %2377 = vmatpush1.msra.mxu0 0.0
        %2378 = vmatprep.subr.mxu0 0.0
        %2379 = vmatpush1.msra.mxu0 0.0
        %2380 = vmatprep.subr.mxu0 0.0
        %2381 = vmatpush1.msra.mxu0 0.0
        %2382 = vmatprep.subr.mxu0 0.0
        %2383 = vmatpush1.msra.mxu0 0.0
        %2384 = vmatprep.subr.mxu0 0.0
        %2385 = vmatpush1.msra.mxu0 0.0
        %2386 = vmatprep.subr.mxu0 0.0
        %2387 = vmatpush1.msra.mxu0 0.0
        %2388 = vmatprep.subr.mxu0 0.0
        %2389 = vmatpush1.msra.mxu0 0.0
        %2390 = vmatprep.subr.mxu0 0.0
        %2391 = vmatpush1.msra.mxu0 0.0
        %2392 = vmatprep.subr.mxu0 0.0
        %2393 = vmatpush1.msra.mxu0 0.0
        %2394 = vmatprep.subr.mxu0 0.0
        %2395 = vmatpush1.msra.mxu0 0.0
        %2396 = vmatprep.subr.mxu0 0.0
        %2397 = vmatpush1.msra.mxu0 0.0
        %2398 = vmatprep.subr.mxu0 0.0
        %2399 = vmatpush1.msra.mxu0 0.0
        %2400 = vmatprep.subr.mxu0 0.0
        %2401 = vmatpush1.msra.mxu0 0.0
        %2402 = vmatprep.subr.mxu0 0.0
        %2403 = vmatpush1.msra.mxu0 0.0
        %2404 = vmatprep.subr.mxu0 0.0
        %2405 = vmatpush1.msra.mxu0 0.0
        %2406 = vmatprep.subr.mxu0 0.0
        %2407 = vmatpush1.msra.mxu0 0.0
        %2408 = vmatprep.subr.mxu0 0.0
        %2409 = vmatpush1.msra.mxu0 0.0
        %2410 = vmatprep.subr.mxu0 0.0
        %2411 = vmatpush1.msra.mxu0 0.0
        %2412 = vmatprep.mubr.f32.mxu0 0.0
        %v2413 = vand.u32 %v2172, 4294901760
        %v2414 = vsub.f32 %v2172, %v2413
        %2415 = vmatmul.mubr.f32.gmra.mrb[0].mxu0 %v2414
        %v2416 = vpop.f32.mrb[0].mxu0
        %v2417 = vadd.f32 %v2337, %v2416
        %v2418 = vpop.f32.mrb[0].mxu0
        %2419 = vmatprep.mubr.f32.mxu0 0.0
        %v2420 = vand.u32 %v2174, 4294901760
        %v2421 = vsub.f32 %v2174, %v2420
        %2422 = vmatmul.mubr.f32.gmra.mrb[0].mxu0 %v2421
        %v2423 = vpop.f32.mrb[0].mxu0
        %v2424 = vadd.f32 %v2343, %v2423
        %v2425 = vpop.f32.mrb[0].mxu0
        %2426 = vdwg.mxu0
        %2427 = vmatprep.subr.mxu0 0.0
        %v2428 = vand.u32 %v2176, 4294901760
        %2429 = vmatpush1.msra.mxu0 %v2428
        %2430 = vmatprep.subr.mxu0 0.0
        %2431 = vmatpush1.msra.mxu0 0.0
        %2432 = vmatprep.subr.mxu0 0.0
        %2433 = vmatpush1.msra.mxu0 0.0
        %2434 = vmatprep.subr.mxu0 0.0
        %2435 = vmatpush1.msra.mxu0 0.0
        %2436 = vmatprep.subr.mxu0 0.0
        %2437 = vmatpush1.msra.mxu0 0.0
        %2438 = vmatprep.subr.mxu0 0.0
        %2439 = vmatpush1.msra.mxu0 0.0
        %2440 = vmatprep.subr.mxu0 0.0
        %2441 = vmatpush1.msra.mxu0 0.0
        %2442 = vmatprep.subr.mxu0 0.0
        %2443 = vmatpush1.msra.mxu0 0.0
        %2444 = vmatprep.subr.mxu0 0.0
        %2445 = vmatpush1.msra.mxu0 0.0
        %2446 = vmatprep.subr.mxu0 0.0
        %2447 = vmatpush1.msra.mxu0 0.0
        %2448 = vmatprep.subr.mxu0 0.0
        %2449 = vmatpush1.msra.mxu0 0.0
        %2450 = vmatprep.subr.mxu0 0.0
        %2451 = vmatpush1.msra.mxu0 0.0
        %2452 = vmatprep.subr.mxu0 0.0
        %2453 = vmatpush1.msra.mxu0 0.0
        %2454 = vmatprep.subr.mxu0 0.0
        %2455 = vmatpush1.msra.mxu0 0.0
        %2456 = vmatprep.subr.mxu0 0.0
        %2457 = vmatpush1.msra.mxu0 0.0
        %2458 = vmatprep.subr.mxu0 0.0
        %2459 = vmatpush1.msra.mxu0 0.0
        %2460 = vmatprep.subr.mxu0 0.0
        %2461 = vmatpush1.msra.mxu0 0.0
        %2462 = vmatprep.subr.mxu0 0.0
        %2463 = vmatpush1.msra.mxu0 0.0
        %2464 = vmatprep.subr.mxu0 0.0
        %2465 = vmatpush1.msra.mxu0 0.0
        %2466 = vmatprep.subr.mxu0 0.0
        %2467 = vmatpush1.msra.mxu0 0.0
        %2468 = vmatprep.subr.mxu0 0.0
        %2469 = vmatpush1.msra.mxu0 0.0
        %2470 = vmatprep.subr.mxu0 0.0
        %2471 = vmatpush1.msra.mxu0 0.0
        %2472 = vmatprep.subr.mxu0 0.0
        %2473 = vmatpush1.msra.mxu0 0.0
        %2474 = vmatprep.subr.mxu0 0.0
        %2475 = vmatpush1.msra.mxu0 0.0
        %2476 = vmatprep.subr.mxu0 0.0
        %2477 = vmatpush1.msra.mxu0 0.0
        %2478 = vmatprep.subr.mxu0 0.0
        %2479 = vmatpush1.msra.mxu0 0.0
        %2480 = vmatprep.subr.mxu0 0.0
        %2481 = vmatpush1.msra.mxu0 0.0
        %2482 = vmatprep.subr.mxu0 0.0
        %2483 = vmatpush1.msra.mxu0 0.0
        %2484 = vmatprep.subr.mxu0 0.0
        %2485 = vmatpush1.msra.mxu0 0.0
        %2486 = vmatprep.subr.mxu0 0.0
        %2487 = vmatpush1.msra.mxu0 0.0
        %2488 = vmatprep.subr.mxu0 0.0
        %2489 = vmatpush1.msra.mxu0 0.0
        %2490 = vmatprep.subr.mxu0 0.0
        %2491 = vmatpush1.msra.mxu0 0.0
        %2492 = vmatprep.mubr.f32.mxu0 0.0
        %v2493 = vand.u32 %v2172, 4294901760
        %v2494 = vsub.f32 %v2172, %v2493
        %v2495 = vand.u32 %v2494, 4294901760
        %2496 = vmatmul.mubr.f32.gmra.mrb[0].mxu0 %v2495
        %v2497 = vpop.f32.mrb[0].mxu0
        %v2498 = vadd.f32 %v2417, %v2497
        %v2499 = vpop.f32.mrb[0].mxu0
        %2500 = vmatprep.mubr.f32.mxu0 0.0
        %v2501 = vand.u32 %v2174, 4294901760
        %v2502 = vsub.f32 %v2174, %v2501
        %v2503 = vand.u32 %v2502, 4294901760
        %2504 = vmatmul.mubr.f32.gmra.mrb[0].mxu0 %v2503
        %v2505 = vpop.f32.mrb[0].mxu0
        %v2506 = vadd.f32 %v2424, %v2505
        %v2507 = vpop.f32.mrb[0].mxu0
        %2508 = vdwg.mxu0
        %2509 = vmatprep.subr.mxu0 0.0
        %v2510 = vand.u32 %v2176, 4294901760
        %v2511 = vsub.f32 %v2176, %v2510
        %v2512 = vand.u32 %v2511, 4294901760
        %2513 = vmatpush1.msra.mxu0 %v2512
        %2514 = vmatprep.subr.mxu0 0.0
        %2515 = vmatpush1.msra.mxu0 0.0
        %2516 = vmatprep.subr.mxu0 0.0
        %2517 = vmatpush1.msra.mxu0 0.0
        %2518 = vmatprep.subr.mxu0 0.0
        %2519 = vmatpush1.msra.mxu0 0.0
        %2520 = vmatprep.subr.mxu0 0.0
        %2521 = vmatpush1.msra.mxu0 0.0
        %2522 = vmatprep.subr.mxu0 0.0
        %2523 = vmatpush1.msra.mxu0 0.0
        %2524 = vmatprep.subr.mxu0 0.0
        %2525 = vmatpush1.msra.mxu0 0.0
        %2526 = vmatprep.subr.mxu0 0.0
        %2527 = vmatpush1.msra.mxu0 0.0
        %2528 = vmatprep.subr.mxu0 0.0
        %2529 = vmatpush1.msra.mxu0 0.0
        %2530 = vmatprep.subr.mxu0 0.0
        %2531 = vmatpush1.msra.mxu0 0.0
        %2532 = vmatprep.subr.mxu0 0.0
        %2533 = vmatpush1.msra.mxu0 0.0
        %2534 = vmatprep.subr.mxu0 0.0
        %2535 = vmatpush1.msra.mxu0 0.0
        %2536 = vmatprep.subr.mxu0 0.0
        %2537 = vmatpush1.msra.mxu0 0.0
        %2538 = vmatprep.subr.mxu0 0.0
        %2539 = vmatpush1.msra.mxu0 0.0
        %2540 = vmatprep.subr.mxu0 0.0
        %2541 = vmatpush1.msra.mxu0 0.0
        %2542 = vmatprep.subr.mxu0 0.0
        %2543 = vmatpush1.msra.mxu0 0.0
        %2544 = vmatprep.subr.mxu0 0.0
        %2545 = vmatpush1.msra.mxu0 0.0
        %2546 = vmatprep.subr.mxu0 0.0
        %2547 = vmatpush1.msra.mxu0 0.0
        %2548 = vmatprep.subr.mxu0 0.0
        %2549 = vmatpush1.msra.mxu0 0.0
        %2550 = vmatprep.subr.mxu0 0.0
        %2551 = vmatpush1.msra.mxu0 0.0
        %2552 = vmatprep.subr.mxu0 0.0
        %2553 = vmatpush1.msra.mxu0 0.0
        %2554 = vmatprep.subr.mxu0 0.0
        %2555 = vmatpush1.msra.mxu0 0.0
        %2556 = vmatprep.subr.mxu0 0.0
        %2557 = vmatpush1.msra.mxu0 0.0
        %2558 = vmatprep.subr.mxu0 0.0
        %2559 = vmatpush1.msra.mxu0 0.0
        %2560 = vmatprep.subr.mxu0 0.0
        %2561 = vmatpush1.msra.mxu0 0.0
        %2562 = vmatprep.subr.mxu0 0.0
        %2563 = vmatpush1.msra.mxu0 0.0
        %2564 = vmatprep.subr.mxu0 0.0
        %2565 = vmatpush1.msra.mxu0 0.0
        %2566 = vmatprep.subr.mxu0 0.0
        %2567 = vmatpush1.msra.mxu0 0.0
        %2568 = vmatprep.subr.mxu0 0.0
        %2569 = vmatpush1.msra.mxu0 0.0
        %2570 = vmatprep.subr.mxu0 0.0
        %2571 = vmatpush1.msra.mxu0 0.0
        %2572 = vmatprep.subr.mxu0 0.0
        %2573 = vmatpush1.msra.mxu0 0.0
        %2574 = vmatprep.subr.mxu0 0.0
        %2575 = vmatpush1.msra.mxu0 0.0
        %2576 = vmatprep.mubr.f32.mxu0 0.0
        %v2577 = vand.u32 %v2172, 4294901760
        %2578 = vmatmul.mubr.f32.gmra.mrb[0].mxu0 %v2577
        %v2579 = vpop.f32.mrb[0].mxu0
        %v2580 = vadd.f32 %v2498, %v2579
        %v2581 = vpop.f32.mrb[0].mxu0
        %2582 = vmatprep.mubr.f32.mxu0 0.0
        %v2583 = vand.u32 %v2174, 4294901760
        %2584 = vmatmul.mubr.f32.gmra.mrb[0].mxu0 %v2583
        %v2585 = vpop.f32.mrb[0].mxu0
        %v2586 = vadd.f32 %v2506, %v2585
        %v2587 = vpop.f32.mrb[0].mxu0
        %2588 = vdwg.mxu0
        %2589 = vmatprep.subr.mxu0 0.0
        %v2590 = vand.u32 %v2176, 4294901760
        %2591 = vmatpush1.msra.mxu0 %v2590
        %2592 = vmatprep.subr.mxu0 0.0
        %2593 = vmatpush1.msra.mxu0 0.0
        %2594 = vmatprep.subr.mxu0 0.0
        %2595 = vmatpush1.msra.mxu0 0.0
        %2596 = vmatprep.subr.mxu0 0.0
        %2597 = vmatpush1.msra.mxu0 0.0
        %2598 = vmatprep.subr.mxu0 0.0
        %2599 = vmatpush1.msra.mxu0 0.0
        %2600 = vmatprep.subr.mxu0 0.0
        %2601 = vmatpush1.msra.mxu0 0.0
        %2602 = vmatprep.subr.mxu0 0.0
        %2603 = vmatpush1.msra.mxu0 0.0
        %2604 = vmatprep.subr.mxu0 0.0
        %2605 = vmatpush1.msra.mxu0 0.0
        %2606 = vmatprep.subr.mxu0 0.0
        %2607 = vmatpush1.msra.mxu0 0.0
        %2608 = vmatprep.subr.mxu0 0.0
        %2609 = vmatpush1.msra.mxu0 0.0
        %2610 = vmatprep.subr.mxu0 0.0
        %2611 = vmatpush1.msra.mxu0 0.0
        %2612 = vmatprep.subr.mxu0 0.0
        %2613 = vmatpush1.msra.mxu0 0.0
        %2614 = vmatprep.subr.mxu0 0.0
        %2615 = vmatpush1.msra.mxu0 0.0
        %2616 = vmatprep.subr.mxu0 0.0
        %2617 = vmatpush1.msra.mxu0 0.0
        %2618 = vmatprep.subr.mxu0 0.0
        %2619 = vmatpush1.msra.mxu0 0.0
        %2620 = vmatprep.subr.mxu0 0.0
        %2621 = vmatpush1.msra.mxu0 0.0
        %2622 = vmatprep.subr.mxu0 0.0
        %2623 = vmatpush1.msra.mxu0 0.0
        %2624 = vmatprep.subr.mxu0 0.0
        %2625 = vmatpush1.msra.mxu0 0.0
        %2626 = vmatprep.subr.mxu0 0.0
        %2627 = vmatpush1.msra.mxu0 0.0
        %2628 = vmatprep.subr.mxu0 0.0
        %2629 = vmatpush1.msra.mxu0 0.0
        %2630 = vmatprep.subr.mxu0 0.0
        %2631 = vmatpush1.msra.mxu0 0.0
        %2632 = vmatprep.subr.mxu0 0.0
        %2633 = vmatpush1.msra.mxu0 0.0
        %2634 = vmatprep.subr.mxu0 0.0
        %2635 = vmatpush1.msra.mxu0 0.0
        %2636 = vmatprep.subr.mxu0 0.0
        %2637 = vmatpush1.msra.mxu0 0.0
        %2638 = vmatprep.subr.mxu0 0.0
        %2639 = vmatpush1.msra.mxu0 0.0
        %2640 = vmatprep.subr.mxu0 0.0
        %2641 = vmatpush1.msra.mxu0 0.0
        %2642 = vmatprep.subr.mxu0 0.0
        %2643 = vmatpush1.msra.mxu0 0.0
        %2644 = vmatprep.subr.mxu0 0.0
        %2645 = vmatpush1.msra.mxu0 0.0
        %2646 = vmatprep.subr.mxu0 0.0
        %2647 = vmatpush1.msra.mxu0 0.0
        %2648 = vmatprep.subr.mxu0 0.0
        %2649 = vmatpush1.msra.mxu0 0.0
        %2650 = vmatprep.subr.mxu0 0.0
        %2651 = vmatpush1.msra.mxu0 0.0
        %2652 = vmatprep.subr.mxu0 0.0
        %2653 = vmatpush1.msra.mxu0 0.0
        %2654 = vmatprep.mubr.f32.mxu0 0.0
        %v2655 = vand.u32 %v2172, 4294901760
        %2656 = vmatmul.mubr.f32.gmra.mrb[0].mxu0 %v2655
        %v2657 = vpop.f32.mrb[0].mxu0
        %v2658 = vadd.f32 %v2580, %v2657
        %v2659 = vpop.f32.mrb[0].mxu0
        %2660 = vmatprep.mubr.f32.mxu0 0.0
        %v2661 = vand.u32 %v2174, 4294901760
        %2662 = vmatmul.mubr.f32.gmra.mrb[0].mxu0 %v2661
        %v2663 = vpop.f32.mrb[0].mxu0
        %v2664 = vadd.f32 %v2586, %v2663
        %v2665 = vpop.f32.mrb[0].mxu0
        %2666 = vdwg.mxu0
        %2667 = vadd.xlane.f32.xlu0 %v2165
        %v2668 = vpop.xlane.xlu0 %2667
        %2669 = vadd.xlane.f32.xlu0 %v2166
        %v2670 = vpop.xlane.xlu0 %2669
        %v2671 = vrcp.pop 128.0
        %v2672 = vmul.f32 %v2668, %v2671
        %v2673 = vmul.f32 %v2670, %v2671
        %2674 = vadd.xlane.f32.xlu0 %v2658
        %v2675 = vpop.xlane.xlu0 %2674
        %2676 = vadd.xlane.f32.xlu0 %v2664
        %v2677 = vpop.xlane.xlu0 %2676
        %v2678 = vmul.f32 %v2675, %v2671
        %v2679 = vmul.f32 %v2677, %v2671
        %v2680 = vmax.f32 %v2672, %v2673
        %v2681 = vrot.slane %v2680, 4
        %v2682 = vmax.f32 %v2680, %v2681
        %v2683 = vrot.slane %v2682, 2
        %v2684 = vmax.f32 %v2682, %v2683
        %v2685 = vrot.slane %v2684, 1
        %v2686 = vmax.f32 %v2684, %v2685
        %s2687 = vtos %v2686
        %v2688 = vstv %s2687
        %v2689 = vmax.f32 %v2678, %v2679
        %v2690 = vrot.slane %v2689, 4
        %v2691 = vmax.f32 %v2689, %v2690
        %v2692 = vrot.slane %v2691, 2
        %v2693 = vmax.f32 %v2691, %v2692
        %v2694 = vrot.slane %v2693, 1
        %v2695 = vmax.f32 %v2693, %v2694
        %s2696 = vtos %v2695
        %v2697 = vstv %s2696
        %v2698 = vmax.f32 %v2688, %v2697
        %v2699 = vsub.f32 %v2672, %v2698
        %v2700 = vsub.f32 %v2673, %v2698
        %v2701 = vmul.f32 %v2699, 1.442695
        %v2702 = vpow.pop %v2701
        %v2703 = vmul.f32 %v2700, 1.442695
        %v2704 = vpow.pop %v2703
        %v2705 = vsub.f32 %v2678, %v2698
        %v2706 = vsub.f32 %v2679, %v2698
        %v2707 = vmul.f32 %v2705, 1.442695
        %v2708 = vpow.pop %v2707
        %v2709 = vmul.f32 %v2706, 1.442695
        %v2710 = vpow.pop %v2709
        %vm2711 = vcmask 7168
        %v2712 = vsel %vm2711, %v2702, 0.0
        %v2713 = vsel %vm2711, %v2704, 0.0
        %v2714 = vadd.f32 %v2712, %v2713
        %2715 = vadd.xlane.f32.xlu0 %v2714
        %v2716 = vpop.xlane.xlu0 %2715
        %v2717 = vrot.slane %v2716, 4
        %v2718 = vadd.f32 %v2716, %v2717
        %v2719 = vrot.slane %v2718, 2
        %v2720 = vadd.f32 %v2718, %v2719
        %v2721 = vrot.slane %v2720, 1
        %v2722 = vadd.f32 %v2720, %v2721
        %s2723 = vtos %v2722
        %v2724 = vstv %s2723
        %v2725 = vsel %vm2711, %v2708, 0.0
        %v2726 = vsel %vm2711, %v2710, 0.0
        %v2727 = vadd.f32 %v2725, %v2726
        %2728 = vadd.xlane.f32.xlu0 %v2727
        %v2729 = vpop.xlane.xlu0 %2728
        %v2730 = vrot.slane %v2729, 4
        %v2731 = vadd.f32 %v2729, %v2730
        %v2732 = vrot.slane %v2731, 2
        %v2733 = vadd.f32 %v2731, %v2732
        %v2734 = vrot.slane %v2733, 1
        %v2735 = vadd.f32 %v2733, %v2734
        %s2736 = vtos %v2735
        %v2737 = vstv %s2736
        %v2738 = vadd.f32 %v2724, %v2737
        %v2739 = vrcp.pop %v2738
        %v2740 = vmul.f32 1.0, %v2739
        %v2741 = vmul.f32 %v2702, %v2740
        %v2742 = vmul.f32 %v2704, %v2740
        %v2743 = vmul.f32 %v2741, %v2165
        %v2744 = vmul.f32 %v2742, %v2166
        %v2745 = vmul.f32 %v2708, %v2740
        %v2746 = vmul.f32 %v2710, %v2740
        %v2747 = vmul.f32 %v2745, %v2658
        %v2748 = vmul.f32 %v2746, %v2664
        %v2749 = vadd.f32 %v2743, %v2747
        %v2750 = vadd.f32 %v2744, %v2748
        %2751 = vst [vmem:[%s176] sm:$0xff] %v2749
        %2752 = vst [vmem:[%s176 + $0x8] sm:$0xff] %v2750
        %s2753 = sand.u32 %s75, 1
        %s2754 = scalar_lea.sflag [#allocation4], %s2753
        %s2755 = sand.u32 %s75, 1
        %s2756 = smul.addr %s2755, 16
        %s2757 = scalar_lea.vmem [#allocation7], %s2756
        // Predicated region
        $region37: #{cru_pallas.1} parent=27 // pred_check
          %p2758 = pneg %p85
        $region38: #{cru_pallas.1} parent=27 // pred_check_branch
          %2760 = sbr.rel (%p2758) target = $region40
        $region39: #{cru_pallas.1} parent=27 // pred_region
          %s2762 = ssub.s32 256, 256
          %2763 = vsyncadd %s2754, %s2762
          %s2764 = smul.addr %s20, 2
          %s2765 = smul.addr %s2764, 128
          %s2766 = scalar_lea.hbm %s2, %s2765
          %s2767 = sshll.u32 %s2757, 4
          %s2768 = int_to_ptr.vmem [resolvable:$true] %s2767
          %2773 = dma.vmem_to_hbm [thread:$0]  %s2768, 256, %s2766, %s2754, 128, 128, 8
        $region40: #{cru_pallas.1} parent=27 // pred_fallthru
          _
      $region28: #{cru_pallas.1} parent=5 // pred_fallthru
        _
      %p2774 = scmp.le.s32.totalorder 2, %s15
      // Predicated region
      $region41: #{cru_pallas.1} parent=5 // pred_check
        %p2775 = pneg %p2774
      $region42: #{cru_pallas.1} parent=5 // pred_check_branch
        %2777 = sbr.rel (%p2775) target = $region44
      $region43: #{cru_pallas.1} parent=5 // pred_region
        %s2778 = ssub.s32 %s15, 2
        // Predicated region
        $region45: #{cru_pallas.1} parent=43 // pred_check
          %p2779 = pneg %p91
        $region46: #{cru_pallas.1} parent=43 // pred_check_branch
          %2781 = sbr.rel (%p2779) target = $region48
        $region47: #{cru_pallas.1} parent=43 // pred_region
          %s2782 = sand.u32 %s76, 1
          %s2783 = scalar_lea.sflag [#allocation4], %s2782
          %s2784 = sand.u32 %s76, 1
          %s2785 = smul.addr %s2784, 16
          %s2786 = scalar_lea.vmem [#allocation7], %s2785
          %2787 = dma.done %s2783, 256
        $region48: #{cru_pallas.1} parent=43 // pred_fallthru
          _
      $region44: #{cru_pallas.1} parent=5 // pred_fallthru
        _
    $region6: #{cru_pallas.1} parent=1 // loop_footer
      %s19 = sadd.s32 1, %s15
    $region7: #{cru_pallas.1} parent=1 // loop_footer_branch
      %14 = sbr.rel target = $region3
    $region8: #{cru_pallas.1} parent=1 // loop_exit
      _
    %2788 = vsyncpa [#allocation3], 1
    %s2789 = scalar_lea.sflag [#allocation3], 1
    %2790 = vsyncpa %s2789, 1
    %2791 = vsyncpa [#allocation6], 1
    %2792 = vsyncpa [#allocation4], 1
    %s2793 = scalar_lea.sflag [#allocation4], 1
    %2794 = vsyncpa %s2793, 1

</llo_original>
